<compile_context>
chip_gen: v7x
topology: tpu7x:2x2x1
jax: 0.10.0
libtpu: 0.0.40
codegen_flags: <defaults>
</compile_context>

<pallas_src>
import functools

import jax
import jax.numpy as jnp
from jax import lax
from jax.experimental import pallas as pl
from jax.experimental.pallas import tpu as pltpu

EPS = 1e-5
# 48 MiB scoped VMEM: above v5e's 16 MiB default, below v7x's 64 MiB physical,
# conservative on v5e/v6e (128 MiB physical).
_VMEM_LIMIT_BYTES = 48 * 1024 * 1024


def _round_up(x, m):
    return (x + m - 1) // m * m


# ------------------------- kernel 1: (fused-norm) conv + running stats -------------------------
def _conv_in_stats_kernel(*refs, fuse_in, s_tile, lead, w_win, c_in, offsets,
                          inv_n_valid, n_tiles):
    """One spatial tile of a 3x3x3 conv (single MXU matmul over 27*C_in) plus one-pass
    InstanceNorm statistics.  The halo'd input window is DMA'd manually from HBM into a
    double-buffered VMEM scratch.  If `fuse_in`, the window is the *previous* stage's raw
    conv output and is normalized + ReLU'd + zero-masked in VMEM before the im2col gather.
    """
    if fuse_in:
        (x_hbm, m_hbm, w_ref, sin_ref, mt_ref, y_ref, st_ref,
         xbuf, mbuf, sem, col_ref, sum_ref, ssq_ref) = refs
    else:
        (x_hbm, w_ref, mt_ref, y_ref, st_ref,
         xbuf, sem, col_ref, sum_ref, ssq_ref) = refs
        m_hbm = mbuf = sin_ref = None

    i = pl.program_id(0)
    s = pl.program_id(1)
    slot = s % 2

    def window_copies(tile_idx, slot_idx):
        # Window of tile `tile_idx` starts at extended lane (tile_idx+1)*s_tile - lead
        # (lead = round_up(halo, 128) keeps the DMA start lane-aligned).
        start = (tile_idx + 1) * s_tile - lead
        cps = [pltpu.make_async_copy(x_hbm.at[i, :, pl.ds(start, w_win)],
                                     xbuf.at[slot_idx], sem.at[0, slot_idx])]
        if fuse_in:
            cps.append(pltpu.make_async_copy(m_hbm.at[:, pl.ds(start, w_win)],
                                             mbuf.at[slot_idx], sem.at[1, slot_idx]))
        return cps

    @pl.when(s == 0)
    def _init():
        sum_ref[...] = jnp.zeros_like(sum_ref)
        ssq_ref[...] = jnp.zeros_like(ssq_ref)
        for cp in window_copies(0, 0):          # prime the pipeline for this batch element
            cp.start()

    for cp in window_copies(s, slot):           # wait for the current window
        cp.wait()

    @pl.when(s + 1 < n_tiles)
    def _prefetch():                            # prefetch the next window into the other slot
        for cp in window_copies(s + 1, 1 - slot):
            cp.start()

    if fuse_in:
        # Fused InstanceNorm + ReLU of the previous stage, applied to the fetched window.
        # jnp.where (not multiply) so never-written halo/tail blocks of the previous
        # stage's output (arbitrary HBM garbage) cannot leak NaN/Inf; masked positions are
        # the zero padding of this conv.
        mean_in = sin_ref[0, :, 0:1]                                  # (C_in, 1) f32
        rstd_in = sin_ref[0, :, 1:2]
        v = xbuf[slot].astype(jnp.float32)                            # (C_in, w_win)
        a = jnp.maximum((v - mean_in) * rstd_in, 0.0)
        a = jnp.where(mbuf[slot] > 0.0, a, 0.0)                       # (1, w_win) broadcast
        x_win = a.astype(col_ref.dtype)
    else:
        x_win = xbuf[slot]                                            # (C_in, w_win)

    # Build the im2col tile in VMEM: tap t is a static lane shift of the halo'd window.
    for t, off in enumerate(offsets):                                 # static 27-tap loop
        col_ref[t * c_in:(t + 1) * c_in, :] = x_win[:, off:off + s_tile]

    # Conv as one MXU matmul over the 27*C_in contraction, f32 accumulation.
    y = jnp.dot(w_ref[...], col_ref[...], preferred_element_type=jnp.float32)

    # One-pass InstanceNorm statistics over valid (interior) output positions only.
    m = mt_ref[...]                                                   # (1, s_tile) in {0,1}
    ym = y * m
    sum_ref[...] += jnp.sum(ym, axis=1, keepdims=True)
    ssq_ref[...] += jnp.sum(ym * y, axis=1, keepdims=True)

    y_ref[0] = y.astype(y_ref.dtype)

    @pl.when(s == n_tiles - 1)
    def _finalize():
        mean = sum_ref[...] * inv_n_valid                             # (C_out, 1)
        var = jnp.maximum(ssq_ref[...] * inv_n_valid - mean * mean, 0.0)
        st_ref[0, :, 0:1] = mean
        st_ref[0, :, 1:2] = lax.rsqrt(var + EPS)


def _conv_stage(x_ext, w_mat, mask_tile, *, s_tile, lead, w_win, offsets, inv_n_valid,
                n_tiles, out_len, out_block_off, compute_dtype,
                stats_in=None, mask_ext=None):
    n, c_in = x_ext.shape[0], x_ext.shape[1]
    c_out, k_len = w_mat.shape
    fuse_in = stats_in is not None

    kernel = functools.partial(
        _conv_in_stats_kernel, fuse_in=fuse_in, s_tile=s_tile, lead=lead, w_win=w_win,
        c_in=c_in, offsets=offsets, inv_n_valid=inv_n_valid, n_tiles=n_tiles)

    in_specs = [pl.BlockSpec(memory_space=pl.ANY)]                    # x_ext (HBM, manual DMA)
    args = [x_ext]
    if fuse_in:
        in_specs.append(pl.BlockSpec(memory_space=pl.ANY))            # mask_ext (HBM)
        args.append(mask_ext)
    in_specs.append(pl.BlockSpec((c_out, k_len), lambda i, s: (0, 0)))  # weight, resident
    args.append(w_mat)
    if fuse_in:
        in_specs.append(pl.BlockSpec((1, c_in, 2), lambda i, s: (i, 0, 0)))  # prev-stage stats
        args.append(stats_in)
    in_specs.append(pl.BlockSpec((1, s_tile), lambda i, s: (0, s)))   # valid-output mask tile
    args.append(mask_tile)

    out_specs = (
        pl.BlockSpec((1, c_out, s_tile), lambda i, s: (i, 0, s + out_block_off)),
        pl.BlockSpec((1, c_out, 2), lambda i, s: (i, 0, 0)),
    )
    scratch = [pltpu.VMEM((2, c_in, w_win), compute_dtype)]           # window double buffer
    if fuse_in:
        scratch.append(pltpu.VMEM((2, 1, w_win), jnp.float32))        # window mask buffer
    scratch += [
        pltpu.SemaphoreType.DMA((2, 2)),                              # [kind, slot]
        pltpu.VMEM((k_len, s_tile), compute_dtype),                   # im2col tile
        pltpu.VMEM((c_out, 1), jnp.float32),                          # running sum
        pltpu.VMEM((c_out, 1), jnp.float32),                          # running sum of squares
    ]

    return pl.pallas_call(
        kernel,
        out_shape=(jax.ShapeDtypeStruct((n, c_out, out_len), compute_dtype),
                   jax.ShapeDtypeStruct((n, c_out, 2), jnp.float32)),
        grid_spec=pltpu.PrefetchScalarGridSpec(
            num_scalar_prefetch=0, grid=(n, n_tiles),
            in_specs=in_specs, out_specs=out_specs, scratch_shapes=scratch),
        compiler_params=pltpu.CompilerParams(
            dimension_semantics=("parallel", "arbitrary"),
            vmem_limit_bytes=_VMEM_LIMIT_BYTES),
    )(*args)


# ------------------------------- kernel 2: final normalize + ReLU ------------------------------
def _norm_relu_kernel(y_ref, st_ref, o_ref):
    y = y_ref[0].astype(jnp.float32)                                  # (C_out, S_TILE)
    mean = st_ref[0, :, 0:1]
    rstd = st_ref[0, :, 1:2]
    o_ref[0] = jnp.maximum((y - mean) * rstd, 0.0).astype(o_ref.dtype)


def _norm_relu(y, stats, *, s_tile, out_dtype):
    n, c_out, sp_pad = y.shape
    n_tiles = sp_pad // s_tile
    return pl.pallas_call(
        _norm_relu_kernel,
        out_shape=jax.ShapeDtypeStruct((n, c_out, sp_pad), out_dtype),
        grid_spec=pltpu.PrefetchScalarGridSpec(
            num_scalar_prefetch=0, grid=(n, n_tiles),
            in_specs=[pl.BlockSpec((1, c_out, s_tile), lambda i, s: (i, 0, s)),
                      pl.BlockSpec((1, c_out, 2), lambda i, s: (i, 0, 0))],
            out_specs=pl.BlockSpec((1, c_out, s_tile), lambda i, s: (i, 0, s))),
        compiler_params=pltpu.CompilerParams(
            dimension_semantics=("parallel", "parallel"),
            vmem_limit_bytes=_VMEM_LIMIT_BYTES),
    )(y, stats)


# ----------------------------------------- JAX glue --------------------------------------------
def _flatten_weight(w, dtype):
    """(C_out, C_in, 3, 3, 3) -> (C_out, 27*C_in), tap-major (kd, kh, kw) then channel."""
    c_out, c_in = w.shape[0], w.shape[1]
    return jnp.transpose(w, (0, 2, 3, 4, 1)).reshape(c_out, 27 * c_in).astype(dtype)


def _valid_mask_flat(dp, hp, wp):
    """1.0 at interior (true output) positions of the padded-flat volume, else 0.0; (sp,)."""
    d = (jnp.arange(dp) >= 1) & (jnp.arange(dp) <= dp - 2)
    h = (jnp.arange(hp) >= 1) & (jnp.arange(hp) <= hp - 2)
    w = (jnp.arange(wp) >= 1) & (jnp.arange(wp) <= wp - 2)
    return (d[:, None, None] & h[None, :, None] & w[None, None, :]).reshape(-1).astype(jnp.float32)


def double_conv_forward(x, w1, b1, w2, b2, *, compute_dtype=jnp.bfloat16, s_tile=4096):
    """DoubleConv forward.  x: (N, C_in, D, H, W) -> (N, C_out, D, H, W) float32.

    b1/b2 are accepted for API parity but unused: a per-channel conv bias cancels exactly
    under the immediately-following InstanceNorm3d(affine=False).
    """
    del b1, b2
    n, c_in, d, h, w = x.shape
    c_out = w1.shape[0]

    dp, hp, wp = d + 2, h + 2, w + 2
    sp = dp * hp * wp                           # padded-flat spatial size
    halo = hp * wp + wp + 1                     # max |flat shift| of a 3x3x3 tap
    lead = _round_up(halo, 128)                 # lane-aligned left reach of a window
    min_tile = _round_up(2 * halo, 128)         # window must fit inside two blocks

    s_tile = max(int(s_tile), min_tile)
    s_tile = min(s_tile, _round_up(sp, 128))
    s_tile = _round_up(s_tile, 128)
    assert s_tile % 128 == 0 and s_tile >= lead

    n_tiles = pl.cdiv(sp, s_tile)
    sp_pad = n_tiles * s_tile
    se = (n_tiles + 2) * s_tile                 # extended layout: [pad block | data | tail]
    w_win = s_tile + 2 * lead
    inv_n_valid = 1.0 / float(d * h * w)

    # Tap t = (kd, kh, kw) reads the window at lane offset p + (lead - halo) + kd*Hp*Wp +
    # kh*Wp + kw for output lane p (same tap ordering as _flatten_weight).
    base = lead - halo
    offsets = tuple(base + kd * hp * wp + kh * wp + kw
                    for kd in range(3) for kh in range(3) for kw in range(3))

    m_flat = _valid_mask_flat(dp, hp, wp)
    mask_tile = jnp.pad(m_flat, (0, sp_pad - sp))[None, :]                 # (1, sp_pad)
    mask_ext = jnp.pad(m_flat, (s_tile, se - s_tile - sp))[None, :]        # (1, se)

    common = dict(s_tile=s_tile, lead=lead, w_win=w_win, offsets=offsets,
                  inv_n_valid=inv_n_valid, n_tiles=n_tiles, compute_dtype=compute_dtype)

    # Stage 1: zero-pad + flatten the input into the extended layout (one cheap XLA pad),
    # conv + stats.  Its output is written directly in the extended layout so stage 2 can
    # DMA halo'd windows straight from it (no host re-pad / separate normalize pass).
    xp = jnp.pad(x, ((0, 0), (0, 0), (1, 1), (1, 1), (1, 1))).reshape(n, c_in, sp)
    x_ext = jnp.pad(xp.astype(compute_dtype), ((0, 0), (0, 0), (s_tile, se - s_tile - sp)))
    y1, st1 = _conv_stage(x_ext, _flatten_weight(w1, compute_dtype), mask_tile,
                          out_len=se, out_block_off=1, **common)

    # Stage 2: conv with stage 1's InstanceNorm + ReLU (+ zero ring mask) fused into the
    # window fetch; output in plain padded-flat layout.
    y2, st2 = _conv_stage(y1, _flatten_weight(w2, compute_dtype), mask_tile,
                          out_len=sp_pad, out_block_off=0,
                          stats_in=st1, mask_ext=mask_ext, **common)

    out = _norm_relu(y2, st2, s_tile=s_tile, out_dtype=jnp.float32)
    return out[:, :, :sp].reshape(n, c_out, dp, hp, wp)[:, :, 1:-1, 1:-1, 1:-1]


# ------------------------------------- pure-JAX reference --------------------------------------
def _ref_forward(x, w1, b1, w2, b2):
    """f32 reference matching the PyTorch module (bias included)."""
    def conv(v, wt, b):
        y = lax.conv_general_dilated(
            v, wt, window_strides=(1, 1, 1),
            padding=((1, 1), (1, 1), (1, 1)),
            dimension_numbers=("NCDHW", "OIDHW", "NCDHW"))
        return y + b[None, :, None, None, None]

    def in_relu(y):
        mean = y.mean(axis=(2, 3, 4), keepdims=True)
        var = jnp.square(y - mean).mean(axis=(2, 3, 4), keepdims=True)
        return jnp.maximum((y - mean) / jnp.sqrt(var + EPS), 0.0)

    return in_relu(conv(in_relu(conv(x, w1, b1)), w2, b2))


if __name__ == "__main__":
    key = jax.random.PRNGKey(0)
    N, C_IN, C_OUT = 2, 4, 8
    D = H = W = 8

    k_x, k_w1, k_b1, k_w2, k_b2 = jax.random.split(key, 5)
    x = jax.random.normal(k_x, (N, C_IN, D, H, W), dtype=jnp.float32)
    w1 = jax.random.normal(k_w1, (C_OUT, C_IN, 3, 3, 3), dtype=jnp.float32) / jnp.sqrt(27.0 * C_IN)
    b1 = jax.random.normal(k_b1, (C_OUT,), dtype=jnp.float32) * 0.1
    w2 = jax.random.normal(k_w2, (C_OUT, C_OUT, 3, 3, 3), dtype=jnp.float32) / jnp.sqrt(27.0 * C_OUT)
    b2 = jax.random.normal(k_b2, (C_OUT,), dtype=jnp.float32) * 0.1

    ref = jax.block_until_ready(_ref_forward(x, w1, b1, w2, b2))

    # Default path: bf16 MXU inputs / intermediates with f32 accumulation and statistics.
    out = jax.block_until_ready(double_conv_forward(x, w1, b1, w2, b2))
    assert out.shape == (N, C_OUT, D, H, W)
    assert jnp.allclose(out, ref, rtol=3e-2, atol=3e-2)

    # Multi-tile f32 path (s_tile=256 -> 4 tiles of the 1000-voxel padded volume): exercises
    # the double-buffered window DMA and the cross-tile statistics accumulation tightly.
    out_f32 = jax.block_until_ready(
        double_conv_forward(x, w1, b1, w2, b2, compute_dtype=jnp.float32, s_tile=256))
    assert jnp.allclose(out_f32, ref, rtol=5e-3, atol=5e-3)

    print("KERNEL_OK")
</pallas_src>

<mosaic_0001>
module attributes {stable_mosaic.version = 11 : i64} {
  func.func @_conv_in_stats_kernel(%arg0: i32, %arg1: i32, %arg2: memref<2x4x3072xbf16, #tpu.memory_space<any>>, %arg3: memref<8x108xbf16, #tpu.memory_space<vmem>>, %arg4: memref<1x1024xf32, #tpu.memory_space<vmem>>, %arg5: memref<1x8x1024xbf16, #tpu.memory_space<vmem>>, %arg6: memref<1x8x2xf32, #tpu.memory_space<vmem>>, %arg7: memref<2x4x1280xbf16, #tpu.memory_space<vmem>>, %arg8: memref<2x2x!tpu.dma_semaphore, #tpu.memory_space<semaphore_mem>>, %arg9: memref<108x1024xbf16, #tpu.memory_space<vmem>>, %arg10: memref<8x1xf32, #tpu.memory_space<vmem>>, %arg11: memref<8x1xf32, #tpu.memory_space<vmem>>) attributes {dimension_semantics = [#tpu.dimension_semantics<parallel>, #tpu.dimension_semantics<arbitrary>], iteration_bounds = array<i64: 2, 1>, scalar_prefetch = 0 : i64, scratch_operands = 5 : i64, tpu.core_type = #tpu.core_type<tc>, window_params = [{}, {pipeline_mode = #tpu.pipeline_mode<synchronous>, transform_indices = @transform_1, window_bounds = array<i64: 8, 108>}, {transform_indices = @transform_2, window_bounds = array<i64: 1, 1024>}, {transform_indices = @transform_3, window_bounds = array<i64: 1, 8, 1024>}, {transform_indices = @transform_4, window_bounds = array<i64: 1, 8, 2>}]} {
    %c2_i32 = arith.constant 2 : i32
    %c0_i32 = arith.constant 0 : i32
    %0 = arith.cmpi eq, %c2_i32, %c0_i32 : i32
    %c1_i32 = arith.constant 1 : i32
    %1 = arith.select %0, %c1_i32, %c2_i32 : i32
    %2 = arith.remsi %arg1, %1 : i32
    %c0_i32_0 = arith.constant 0 : i32
    %3 = arith.cmpi ne, %2, %c0_i32_0 : i32
    %c0_i32_1 = arith.constant 0 : i32
    %4 = arith.cmpi slt, %2, %c0_i32_1 : i32
    %c0_i32_2 = arith.constant 0 : i32
    %5 = arith.cmpi slt, %1, %c0_i32_2 : i32
    %6 = arith.xori %4, %5 : i1
    %7 = arith.andi %6, %3 : i1
    %8 = arith.addi %2, %1 : i32
    %9 = arith.select %7, %8, %2 : i32
    %c0_i32_3 = arith.constant 0 : i32
    %10 = arith.cmpi eq, %arg1, %c0_i32_3 : i32
    %11 = arith.extui %10 : i1 to i32
    %c0_i32_4 = arith.constant 0 : i32
    %12 = arith.cmpi ne, %11, %c0_i32_4 : i32
    scf.if %12 {
      %cst_63 = arith.constant 0.000000e+00 : f32
      %107 = vector.broadcast %cst_63 : f32 to vector<8x1xf32>
      %c0_64 = arith.constant 0 : index
      %c0_65 = arith.constant 0 : index
      %108 = vector.load %arg10[%c0_64, %c0_65] : memref<8x1xf32, #tpu.memory_space<vmem>>, vector<8x1xf32>
      tpu.vector_store %arg10[%c0_64, %c0_65], %107 {strides = array<i32>} : memref<8x1xf32, #tpu.memory_space<vmem>>, vector<8x1xf32>,
      %cst_66 = arith.constant 0.000000e+00 : f32
      %109 = vector.broadcast %cst_66 : f32 to vector<8x1xf32>
      %c0_67 = arith.constant 0 : index
      %c0_68 = arith.constant 0 : index
      %110 = vector.load %arg11[%c0_67, %c0_68] : memref<8x1xf32, #tpu.memory_space<vmem>>, vector<8x1xf32>
      tpu.vector_store %arg11[%c0_67, %c0_68], %109 {strides = array<i32>} : memref<8x1xf32, #tpu.memory_space<vmem>>, vector<8x1xf32>,
      %c0_i32_69 = arith.constant 0 : i32
      %c0_i32_70 = arith.constant 0 : i32
      %c0_i32_71 = arith.constant 0 : i32
      %c0_i32_72 = arith.constant 0 : i32
      %c896_i32 = arith.constant 896 : i32
      %111 = tpu.memref_slice %arg2[%arg0, %c0_i32_72, %c896_i32] : memref<2x4x3072xbf16, #tpu.memory_space<any>> -> memref<1x4x1280xbf16, #tpu.memory_space<any>>
      %112 = tpu.memref_squeeze %111 : memref<1x4x1280xbf16, #tpu.memory_space<any>> -> memref<4x1280xbf16, #tpu.memory_space<any>>
      %c0_i32_73 = arith.constant 0 : i32
      %c0_i32_74 = arith.constant 0 : i32
      %113 = tpu.memref_slice %arg7[%c0_i32_69, %c0_i32_73, %c0_i32_74] : memref<2x4x1280xbf16, #tpu.memory_space<vmem>> -> memref<1x4x1280xbf16, #tpu.memory_space<vmem>>
      %114 = tpu.memref_squeeze %113 : memref<1x4x1280xbf16, #tpu.memory_space<vmem>> -> memref<4x1280xbf16, #tpu.memory_space<vmem>>
      %115 = tpu.memref_slice %arg8[%c0_i32_70, %c0_i32_71] : memref<2x2x!tpu.dma_semaphore, #tpu.memory_space<semaphore_mem>> -> memref<1x1x!tpu.dma_semaphore, #tpu.memory_space<semaphore_mem>>
      %116 = tpu.memref_squeeze %115 : memref<1x1x!tpu.dma_semaphore, #tpu.memory_space<semaphore_mem>> -> memref<!tpu.dma_semaphore, #tpu.memory_space<semaphore_mem>>
      tpu.enqueue_dma source(%112 : memref<4x1280xbf16, #tpu.memory_space<any>>) target(%114 : memref<4x1280xbf16, #tpu.memory_space<vmem>>) target_semaphore(%116 : memref<!tpu.dma_semaphore, #tpu.memory_space<semaphore_mem>>)
    } else {
    }
    %c1_i32_5 = arith.constant 1 : i32
    %13 = arith.addi %arg1, %c1_i32_5 : i32
    %c1024_i32 = arith.constant 1024 : i32
    %14 = arith.muli %13, %c1024_i32 : i32
    %c128_i32 = arith.constant 128 : i32
    %15 = arith.subi %14, %c128_i32 : i32
    %c0_i32_6 = arith.constant 0 : i32
    %c0_i32_7 = arith.constant 0 : i32
    %16 = tpu.memref_slice %arg2[%arg0, %c0_i32_7, %15] : memref<2x4x3072xbf16, #tpu.memory_space<any>> -> memref<1x4x1280xbf16, #tpu.memory_space<any>>
    %17 = tpu.memref_squeeze %16 : memref<1x4x1280xbf16, #tpu.memory_space<any>> -> memref<4x1280xbf16, #tpu.memory_space<any>>
    %c0_i32_8 = arith.constant 0 : i32
    %c0_i32_9 = arith.constant 0 : i32
    %18 = tpu.memref_slice %arg7[%9, %c0_i32_8, %c0_i32_9] : memref<2x4x1280xbf16, #tpu.memory_space<vmem>> -> memref<1x4x1280xbf16, #tpu.memory_space<vmem>>
    %19 = tpu.memref_squeeze %18 : memref<1x4x1280xbf16, #tpu.memory_space<vmem>> -> memref<4x1280xbf16, #tpu.memory_space<vmem>>
    %20 = tpu.memref_slice %arg8[%c0_i32_6, %9] : memref<2x2x!tpu.dma_semaphore, #tpu.memory_space<semaphore_mem>> -> memref<1x1x!tpu.dma_semaphore, #tpu.memory_space<semaphore_mem>>
    %21 = tpu.memref_squeeze %20 : memref<1x1x!tpu.dma_semaphore, #tpu.memory_space<semaphore_mem>> -> memref<!tpu.dma_semaphore, #tpu.memory_space<semaphore_mem>>
    tpu.wait_dma2 semaphore(%21 : memref<!tpu.dma_semaphore, #tpu.memory_space<semaphore_mem>>) src(%17 : memref<4x1280xbf16, #tpu.memory_space<any>>) dst(%19 : memref<4x1280xbf16, #tpu.memory_space<vmem>>)
    %c1_i32_10 = arith.constant 1 : i32
    %22 = arith.addi %arg1, %c1_i32_10 : i32
    %c1_i32_11 = arith.constant 1 : i32
    %23 = arith.cmpi slt, %22, %c1_i32_11 : i32
    %24 = arith.extui %23 : i1 to i32
    %c0_i32_12 = arith.constant 0 : i32
    %25 = arith.cmpi ne, %24, %c0_i32_12 : i32
    scf.if %25 {
      %c1_i32_63 = arith.constant 1 : i32
      %107 = arith.addi %arg1, %c1_i32_63 : i32
      %c1_i32_64 = arith.constant 1 : i32
      %108 = arith.subi %c1_i32_64, %9 : i32
      %c1_i32_65 = arith.constant 1 : i32
      %109 = arith.addi %107, %c1_i32_65 : i32
      %c1024_i32_66 = arith.constant 1024 : i32
      %110 = arith.muli %109, %c1024_i32_66 : i32
      %c128_i32_67 = arith.constant 128 : i32
      %111 = arith.subi %110, %c128_i32_67 : i32
      %c0_i32_68 = arith.constant 0 : i32
      %c0_i32_69 = arith.constant 0 : i32
      %112 = tpu.memref_slice %arg2[%arg0, %c0_i32_69, %111] : memref<2x4x3072xbf16, #tpu.memory_space<any>> -> memref<1x4x1280xbf16, #tpu.memory_space<any>>
      %113 = tpu.memref_squeeze %112 : memref<1x4x1280xbf16, #tpu.memory_space<any>> -> memref<4x1280xbf16, #tpu.memory_space<any>>
      %c0_i32_70 = arith.constant 0 : i32
      %c0_i32_71 = arith.constant 0 : i32
      %114 = tpu.memref_slice %arg7[%108, %c0_i32_70, %c0_i32_71] : memref<2x4x1280xbf16, #tpu.memory_space<vmem>> -> memref<1x4x1280xbf16, #tpu.memory_space<vmem>>
      %115 = tpu.memref_squeeze %114 : memref<1x4x1280xbf16, #tpu.memory_space<vmem>> -> memref<4x1280xbf16, #tpu.memory_space<vmem>>
      %116 = tpu.memref_slice %arg8[%c0_i32_68, %108] : memref<2x2x!tpu.dma_semaphore, #tpu.memory_space<semaphore_mem>> -> memref<1x1x!tpu.dma_semaphore, #tpu.memory_space<semaphore_mem>>
      %117 = tpu.memref_squeeze %116 : memref<1x1x!tpu.dma_semaphore, #tpu.memory_space<semaphore_mem>> -> memref<!tpu.dma_semaphore, #tpu.memory_space<semaphore_mem>>
      tpu.enqueue_dma source(%113 : memref<4x1280xbf16, #tpu.memory_space<any>>) target(%115 : memref<4x1280xbf16, #tpu.memory_space<vmem>>) target_semaphore(%117 : memref<!tpu.dma_semaphore, #tpu.memory_space<semaphore_mem>>)
    } else {
    }
    %26 = arith.index_cast %9 : i32 to index
    %c0 = arith.constant 0 : index
    %c0_13 = arith.constant 0 : index
    %27 = vector.load %arg7[%26, %c0, %c0_13] : memref<2x4x1280xbf16, #tpu.memory_space<vmem>>, vector<1x4x1280xbf16>
    %28 = vector.shape_cast %27 : vector<1x4x1280xbf16> to vector<4x1280xbf16>
    %29 = vector.extract_strided_slice %28 {offsets = [0, 17], sizes = [4, 1024], strides = [1, 1]} : vector<4x1280xbf16> to vector<4x1024xbf16>
    %c0_14 = arith.constant 0 : index
    %c0_15 = arith.constant 0 : index
    %30 = vector.load %arg9[%c0_14, %c0_15] : memref<108x1024xbf16, #tpu.memory_space<vmem>>, vector<4x1024xbf16>
    tpu.vector_store %arg9[%c0_14, %c0_15], %29 {strides = array<i32>} : memref<108x1024xbf16, #tpu.memory_space<vmem>>, vector<4x1024xbf16>,
    %31 = vector.extract_strided_slice %28 {offsets = [0, 18], sizes = [4, 1024], strides = [1, 1]} : vector<4x1280xbf16> to vector<4x1024xbf16>
    %c4 = arith.constant 4 : index
    %c0_16 = arith.constant 0 : index
    %32 = vector.load %arg9[%c4, %c0_16] : memref<108x1024xbf16, #tpu.memory_space<vmem>>, vector<4x1024xbf16>
    tpu.vector_store %arg9[%c4, %c0_16], %31 {strides = array<i32>} : memref<108x1024xbf16, #tpu.memory_space<vmem>>, vector<4x1024xbf16>,
    %33 = vector.extract_strided_slice %28 {offsets = [0, 19], sizes = [4, 1024], strides = [1, 1]} : vector<4x1280xbf16> to vector<4x1024xbf16>
    %c8 = arith.constant 8 : index
    %c0_17 = arith.constant 0 : index
    %34 = vector.load %arg9[%c8, %c0_17] : memref<108x1024xbf16, #tpu.memory_space<vmem>>, vector<4x1024xbf16>
    tpu.vector_store %arg9[%c8, %c0_17], %33 {strides = array<i32>} : memref<108x1024xbf16, #tpu.memory_space<vmem>>, vector<4x1024xbf16>,
    %35 = vector.extract_strided_slice %28 {offsets = [0, 27], sizes = [4, 1024], strides = [1, 1]} : vector<4x1280xbf16> to vector<4x1024xbf16>
    %c12 = arith.constant 12 : index
    %c0_18 = arith.constant 0 : index
    %36 = vector.load %arg9[%c12, %c0_18] : memref<108x1024xbf16, #tpu.memory_space<vmem>>, vector<4x1024xbf16>
    tpu.vector_store %arg9[%c12, %c0_18], %35 {strides = array<i32>} : memref<108x1024xbf16, #tpu.memory_space<vmem>>, vector<4x1024xbf16>,
    %37 = vector.extract_strided_slice %28 {offsets = [0, 28], sizes = [4, 1024], strides = [1, 1]} : vector<4x1280xbf16> to vector<4x1024xbf16>
    %c16 = arith.constant 16 : index
    %c0_19 = arith.constant 0 : index
    %38 = vector.load %arg9[%c16, %c0_19] : memref<108x1024xbf16, #tpu.memory_space<vmem>>, vector<4x1024xbf16>
    tpu.vector_store %arg9[%c16, %c0_19], %37 {strides = array<i32>} : memref<108x1024xbf16, #tpu.memory_space<vmem>>, vector<4x1024xbf16>,
    %39 = vector.extract_strided_slice %28 {offsets = [0, 29], sizes = [4, 1024], strides = [1, 1]} : vector<4x1280xbf16> to vector<4x1024xbf16>
    %c20 = arith.constant 20 : index
    %c0_20 = arith.constant 0 : index
    %40 = vector.load %arg9[%c20, %c0_20] : memref<108x1024xbf16, #tpu.memory_space<vmem>>, vector<4x1024xbf16>
    tpu.vector_store %arg9[%c20, %c0_20], %39 {strides = array<i32>} : memref<108x1024xbf16, #tpu.memory_space<vmem>>, vector<4x1024xbf16>,
    %41 = vector.extract_strided_slice %28 {offsets = [0, 37], sizes = [4, 1024], strides = [1, 1]} : vector<4x1280xbf16> to vector<4x1024xbf16>
    %c24 = arith.constant 24 : index
    %c0_21 = arith.constant 0 : index
    %42 = vector.load %arg9[%c24, %c0_21] : memref<108x1024xbf16, #tpu.memory_space<vmem>>, vector<4x1024xbf16>
    tpu.vector_store %arg9[%c24, %c0_21], %41 {strides = array<i32>} : memref<108x1024xbf16, #tpu.memory_space<vmem>>, vector<4x1024xbf16>,
    %43 = vector.extract_strided_slice %28 {offsets = [0, 38], sizes = [4, 1024], strides = [1, 1]} : vector<4x1280xbf16> to vector<4x1024xbf16>
    %c28 = arith.constant 28 : index
    %c0_22 = arith.constant 0 : index
    %44 = vector.load %arg9[%c28, %c0_22] : memref<108x1024xbf16, #tpu.memory_space<vmem>>, vector<4x1024xbf16>
    tpu.vector_store %arg9[%c28, %c0_22], %43 {strides = array<i32>} : memref<108x1024xbf16, #tpu.memory_space<vmem>>, vector<4x1024xbf16>,
    %45 = vector.extract_strided_slice %28 {offsets = [0, 39], sizes = [4, 1024], strides = [1, 1]} : vector<4x1280xbf16> to vector<4x1024xbf16>
    %c32 = arith.constant 32 : index
    %c0_23 = arith.constant 0 : index
    %46 = vector.load %arg9[%c32, %c0_23] : memref<108x1024xbf16, #tpu.memory_space<vmem>>, vector<4x1024xbf16>
    tpu.vector_store %arg9[%c32, %c0_23], %45 {strides = array<i32>} : memref<108x1024xbf16, #tpu.memory_space<vmem>>, vector<4x1024xbf16>,
    %47 = vector.extract_strided_slice %28 {offsets = [0, 117], sizes = [4, 1024], strides = [1, 1]} : vector<4x1280xbf16> to vector<4x1024xbf16>
    %c36 = arith.constant 36 : index
    %c0_24 = arith.constant 0 : index
    %48 = vector.load %arg9[%c36, %c0_24] : memref<108x1024xbf16, #tpu.memory_space<vmem>>, vector<4x1024xbf16>
    tpu.vector_store %arg9[%c36, %c0_24], %47 {strides = array<i32>} : memref<108x1024xbf16, #tpu.memory_space<vmem>>, vector<4x1024xbf16>,
    %49 = vector.extract_strided_slice %28 {offsets = [0, 118], sizes = [4, 1024], strides = [1, 1]} : vector<4x1280xbf16> to vector<4x1024xbf16>
    %c40 = arith.constant 40 : index
    %c0_25 = arith.constant 0 : index
    %50 = vector.load %arg9[%c40, %c0_25] : memref<108x1024xbf16, #tpu.memory_space<vmem>>, vector<4x1024xbf16>
    tpu.vector_store %arg9[%c40, %c0_25], %49 {strides = array<i32>} : memref<108x1024xbf16, #tpu.memory_space<vmem>>, vector<4x1024xbf16>,
    %51 = vector.extract_strided_slice %28 {offsets = [0, 119], sizes = [4, 1024], strides = [1, 1]} : vector<4x1280xbf16> to vector<4x1024xbf16>
    %c44 = arith.constant 44 : index
    %c0_26 = arith.constant 0 : index
    %52 = vector.load %arg9[%c44, %c0_26] : memref<108x1024xbf16, #tpu.memory_space<vmem>>, vector<4x1024xbf16>
    tpu.vector_store %arg9[%c44, %c0_26], %51 {strides = array<i32>} : memref<108x1024xbf16, #tpu.memory_space<vmem>>, vector<4x1024xbf16>,
    %53 = vector.extract_strided_slice %28 {offsets = [0, 127], sizes = [4, 1024], strides = [1, 1]} : vector<4x1280xbf16> to vector<4x1024xbf16>
    %c48 = arith.constant 48 : index
    %c0_27 = arith.constant 0 : index
    %54 = vector.load %arg9[%c48, %c0_27] : memref<108x1024xbf16, #tpu.memory_space<vmem>>, vector<4x1024xbf16>
    tpu.vector_store %arg9[%c48, %c0_27], %53 {strides = array<i32>} : memref<108x1024xbf16, #tpu.memory_space<vmem>>, vector<4x1024xbf16>,
    %55 = vector.extract_strided_slice %28 {offsets = [0, 128], sizes = [4, 1024], strides = [1, 1]} : vector<4x1280xbf16> to vector<4x1024xbf16>
    %c52 = arith.constant 52 : index
    %c0_28 = arith.constant 0 : index
    %56 = vector.load %arg9[%c52, %c0_28] : memref<108x1024xbf16, #tpu.memory_space<vmem>>, vector<4x1024xbf16>
    tpu.vector_store %arg9[%c52, %c0_28], %55 {strides = array<i32>} : memref<108x1024xbf16, #tpu.memory_space<vmem>>, vector<4x1024xbf16>,
    %57 = vector.extract_strided_slice %28 {offsets = [0, 129], sizes = [4, 1024], strides = [1, 1]} : vector<4x1280xbf16> to vector<4x1024xbf16>
    %c56 = arith.constant 56 : index
    %c0_29 = arith.constant 0 : index
    %58 = vector.load %arg9[%c56, %c0_29] : memref<108x1024xbf16, #tpu.memory_space<vmem>>, vector<4x1024xbf16>
    tpu.vector_store %arg9[%c56, %c0_29], %57 {strides = array<i32>} : memref<108x1024xbf16, #tpu.memory_space<vmem>>, vector<4x1024xbf16>,
    %59 = vector.extract_strided_slice %28 {offsets = [0, 137], sizes = [4, 1024], strides = [1, 1]} : vector<4x1280xbf16> to vector<4x1024xbf16>
    %c60 = arith.constant 60 : index
    %c0_30 = arith.constant 0 : index
    %60 = vector.load %arg9[%c60, %c0_30] : memref<108x1024xbf16, #tpu.memory_space<vmem>>, vector<4x1024xbf16>
    tpu.vector_store %arg9[%c60, %c0_30], %59 {strides = array<i32>} : memref<108x1024xbf16, #tpu.memory_space<vmem>>, vector<4x1024xbf16>,
    %61 = vector.extract_strided_slice %28 {offsets = [0, 138], sizes = [4, 1024], strides = [1, 1]} : vector<4x1280xbf16> to vector<4x1024xbf16>
    %c64 = arith.constant 64 : index
    %c0_31 = arith.constant 0 : index
    %62 = vector.load %arg9[%c64, %c0_31] : memref<108x1024xbf16, #tpu.memory_space<vmem>>, vector<4x1024xbf16>
    tpu.vector_store %arg9[%c64, %c0_31], %61 {strides = array<i32>} : memref<108x1024xbf16, #tpu.memory_space<vmem>>, vector<4x1024xbf16>,
    %63 = vector.extract_strided_slice %28 {offsets = [0, 139], sizes = [4, 1024], strides = [1, 1]} : vector<4x1280xbf16> to vector<4x1024xbf16>
    %c68 = arith.constant 68 : index
    %c0_32 = arith.constant 0 : index
    %64 = vector.load %arg9[%c68, %c0_32] : memref<108x1024xbf16, #tpu.memory_space<vmem>>, vector<4x1024xbf16>
    tpu.vector_store %arg9[%c68, %c0_32], %63 {strides = array<i32>} : memref<108x1024xbf16, #tpu.memory_space<vmem>>, vector<4x1024xbf16>,
    %65 = vector.extract_strided_slice %28 {offsets = [0, 217], sizes = [4, 1024], strides = [1, 1]} : vector<4x1280xbf16> to vector<4x1024xbf16>
    %c72 = arith.constant 72 : index
    %c0_33 = arith.constant 0 : index
    %66 = vector.load %arg9[%c72, %c0_33] : memref<108x1024xbf16, #tpu.memory_space<vmem>>, vector<4x1024xbf16>
    tpu.vector_store %arg9[%c72, %c0_33], %65 {strides = array<i32>} : memref<108x1024xbf16, #tpu.memory_space<vmem>>, vector<4x1024xbf16>,
    %67 = vector.extract_strided_slice %28 {offsets = [0, 218], sizes = [4, 1024], strides = [1, 1]} : vector<4x1280xbf16> to vector<4x1024xbf16>
    %c76 = arith.constant 76 : index
    %c0_34 = arith.constant 0 : index
    %68 = vector.load %arg9[%c76, %c0_34] : memref<108x1024xbf16, #tpu.memory_space<vmem>>, vector<4x1024xbf16>
    tpu.vector_store %arg9[%c76, %c0_34], %67 {strides = array<i32>} : memref<108x1024xbf16, #tpu.memory_space<vmem>>, vector<4x1024xbf16>,
    %69 = vector.extract_strided_slice %28 {offsets = [0, 219], sizes = [4, 1024], strides = [1, 1]} : vector<4x1280xbf16> to vector<4x1024xbf16>
    %c80 = arith.constant 80 : index
    %c0_35 = arith.constant 0 : index
    %70 = vector.load %arg9[%c80, %c0_35] : memref<108x1024xbf16, #tpu.memory_space<vmem>>, vector<4x1024xbf16>
    tpu.vector_store %arg9[%c80, %c0_35], %69 {strides = array<i32>} : memref<108x1024xbf16, #tpu.memory_space<vmem>>, vector<4x1024xbf16>,
    %71 = vector.extract_strided_slice %28 {offsets = [0, 227], sizes = [4, 1024], strides = [1, 1]} : vector<4x1280xbf16> to vector<4x1024xbf16>
    %c84 = arith.constant 84 : index
    %c0_36 = arith.constant 0 : index
    %72 = vector.load %arg9[%c84, %c0_36] : memref<108x1024xbf16, #tpu.memory_space<vmem>>, vector<4x1024xbf16>
    tpu.vector_store %arg9[%c84, %c0_36], %71 {strides = array<i32>} : memref<108x1024xbf16, #tpu.memory_space<vmem>>, vector<4x1024xbf16>,
    %73 = vector.extract_strided_slice %28 {offsets = [0, 228], sizes = [4, 1024], strides = [1, 1]} : vector<4x1280xbf16> to vector<4x1024xbf16>
    %c88 = arith.constant 88 : index
    %c0_37 = arith.constant 0 : index
    %74 = vector.load %arg9[%c88, %c0_37] : memref<108x1024xbf16, #tpu.memory_space<vmem>>, vector<4x1024xbf16>
    tpu.vector_store %arg9[%c88, %c0_37], %73 {strides = array<i32>} : memref<108x1024xbf16, #tpu.memory_space<vmem>>, vector<4x1024xbf16>,
    %75 = vector.extract_strided_slice %28 {offsets = [0, 229], sizes = [4, 1024], strides = [1, 1]} : vector<4x1280xbf16> to vector<4x1024xbf16>
    %c92 = arith.constant 92 : index
    %c0_38 = arith.constant 0 : index
    %76 = vector.load %arg9[%c92, %c0_38] : memref<108x1024xbf16, #tpu.memory_space<vmem>>, vector<4x1024xbf16>
    tpu.vector_store %arg9[%c92, %c0_38], %75 {strides = array<i32>} : memref<108x1024xbf16, #tpu.memory_space<vmem>>, vector<4x1024xbf16>,
    %77 = vector.extract_strided_slice %28 {offsets = [0, 237], sizes = [4, 1024], strides = [1, 1]} : vector<4x1280xbf16> to vector<4x1024xbf16>
    %c96 = arith.constant 96 : index
    %c0_39 = arith.constant 0 : index
    %78 = vector.load %arg9[%c96, %c0_39] : memref<108x1024xbf16, #tpu.memory_space<vmem>>, vector<4x1024xbf16>
    tpu.vector_store %arg9[%c96, %c0_39], %77 {strides = array<i32>} : memref<108x1024xbf16, #tpu.memory_space<vmem>>, vector<4x1024xbf16>,
    %79 = vector.extract_strided_slice %28 {offsets = [0, 238], sizes = [4, 1024], strides = [1, 1]} : vector<4x1280xbf16> to vector<4x1024xbf16>
    %c100 = arith.constant 100 : index
    %c0_40 = arith.constant 0 : index
    %80 = vector.load %arg9[%c100, %c0_40] : memref<108x1024xbf16, #tpu.memory_space<vmem>>, vector<4x1024xbf16>
    tpu.vector_store %arg9[%c100, %c0_40], %79 {strides = array<i32>} : memref<108x1024xbf16, #tpu.memory_space<vmem>>, vector<4x1024xbf16>,
    %81 = vector.extract_strided_slice %28 {offsets = [0, 239], sizes = [4, 1024], strides = [1, 1]} : vector<4x1280xbf16> to vector<4x1024xbf16>
    %c104 = arith.constant 104 : index
    %c0_41 = arith.constant 0 : index
    %82 = vector.load %arg9[%c104, %c0_41] : memref<108x1024xbf16, #tpu.memory_space<vmem>>, vector<4x1024xbf16>
    tpu.vector_store %arg9[%c104, %c0_41], %81 {strides = array<i32>} : memref<108x1024xbf16, #tpu.memory_space<vmem>>, vector<4x1024xbf16>,
    %c0_42 = arith.constant 0 : index
    %c0_43 = arith.constant 0 : index
    %83 = vector.load %arg3[%c0_42, %c0_43] : memref<8x108xbf16, #tpu.memory_space<vmem>>, vector<8x108xbf16>
    %c0_44 = arith.constant 0 : index
    %c0_45 = arith.constant 0 : index
    %84 = vector.load %arg9[%c0_44, %c0_45] : memref<108x1024xbf16, #tpu.memory_space<vmem>>, vector<108x1024xbf16>
    %cst = arith.constant dense<0.000000e+00> : vector<8x1024xf32>
    %85 = tpu.matmul %83, %84, %cst {dimension_numbers = #tpu.dot_dimension_numbers<[1], [0], [0], [1], [0, 0, 1, 1], [], []>} : vector<8x108xbf16>, vector<108x1024xbf16>, vector<8x1024xf32> -> vector<8x1024xf32>
    %c0_46 = arith.constant 0 : index
    %c0_47 = arith.constant 0 : index
    %86 = vector.load %arg4[%c0_46, %c0_47] : memref<1x1024xf32, #tpu.memory_space<vmem>>, vector<1x1024xf32>
    %87 = vector.broadcast %86 : vector<1x1024xf32> to vector<8x1024xf32>
    %88 = arith.mulf %85, %87 : vector<8x1024xf32>
    %c0_48 = arith.constant 0 : index
    %c0_49 = arith.constant 0 : index
    %89 = vector.load %arg10[%c0_48, %c0_49] : memref<8x1xf32, #tpu.memory_space<vmem>>, vector<8x1xf32>
    %cst_50 = arith.constant dense<0.000000e+00> : vector<8xf32>
    %90 = vector.multi_reduction <add>, %88, %cst_50 [1] : vector<8x1024xf32> to vector<8xf32>
    %91 = vector.shape_cast %90 : vector<8xf32> to vector<8x1xf32>
    %92 = arith.addf %89, %91 : vector<8x1xf32>
    %c0_51 = arith.constant 0 : index
    %c0_52 = arith.constant 0 : index
    %93 = vector.load %arg10[%c0_51, %c0_52] : memref<8x1xf32, #tpu.memory_space<vmem>>, vector<8x1xf32>
    tpu.vector_store %arg10[%c0_51, %c0_52], %92 {strides = array<i32>} : memref<8x1xf32, #tpu.memory_space<vmem>>, vector<8x1xf32>,
    %c0_53 = arith.constant 0 : index
    %c0_54 = arith.constant 0 : index
    %94 = vector.load %arg11[%c0_53, %c0_54] : memref<8x1xf32, #tpu.memory_space<vmem>>, vector<8x1xf32>
    %95 = arith.mulf %88, %85 : vector<8x1024xf32>
    %cst_55 = arith.constant dense<0.000000e+00> : vector<8xf32>
    %96 = vector.multi_reduction <add>, %95, %cst_55 [1] : vector<8x1024xf32> to vector<8xf32>
    %97 = vector.shape_cast %96 : vector<8xf32> to vector<8x1xf32>
    %98 = arith.addf %94, %97 : vector<8x1xf32>
    %c0_56 = arith.constant 0 : index
    %c0_57 = arith.constant 0 : index
    %99 = vector.load %arg11[%c0_56, %c0_57] : memref<8x1xf32, #tpu.memory_space<vmem>>, vector<8x1xf32>
    tpu.vector_store %arg11[%c0_56, %c0_57], %98 {strides = array<i32>} : memref<8x1xf32, #tpu.memory_space<vmem>>, vector<8x1xf32>,
    %100 = arith.truncf %85 : vector<8x1024xf32> to vector<8x1024xbf16>
    %c0_58 = arith.constant 0 : index
    %c0_59 = arith.constant 0 : index
    %c0_60 = arith.constant 0 : index
    %101 = vector.load %arg5[%c0_58, %c0_59, %c0_60] : memref<1x8x1024xbf16, #tpu.memory_space<vmem>>, vector<1x8x1024xbf16>
    %102 = vector.shape_cast %101 : vector<1x8x1024xbf16> to vector<8x1024xbf16>
    %103 = vector.shape_cast %100 : vector<8x1024xbf16> to vector<1x8x1024xbf16>
    tpu.vector_store %arg5[%c0_58, %c0_59, %c0_60], %103 {strides = array<i32>} : memref<1x8x1024xbf16, #tpu.memory_space<vmem>>, vector<1x8x1024xbf16>,
    %c0_i32_61 = arith.constant 0 : i32
    %104 = arith.cmpi eq, %arg1, %c0_i32_61 : i32
    %105 = arith.extui %104 : i1 to i32
    %c0_i32_62 = arith.constant 0 : i32
    %106 = arith.cmpi ne, %105, %c0_i32_62 : i32
    scf.if %106 {
      %c0_63 = arith.constant 0 : index
      %c0_64 = arith.constant 0 : index
      %107 = vector.load %arg10[%c0_63, %c0_64] : memref<8x1xf32, #tpu.memory_space<vmem>>, vector<8x1xf32>
      %cst_65 = arith.constant 0.001953125 : f32
      %108 = vector.broadcast %cst_65 : f32 to vector<8x1xf32>
      %109 = arith.mulf %107, %108 : vector<8x1xf32>
      %c0_66 = arith.constant 0 : index
      %c0_67 = arith.constant 0 : index
      %110 = vector.load %arg11[%c0_66, %c0_67] : memref<8x1xf32, #tpu.memory_space<vmem>>, vector<8x1xf32>
      %cst_68 = arith.constant 0.001953125 : f32
      %111 = vector.broadcast %cst_68 : f32 to vector<8x1xf32>
      %112 = arith.mulf %110, %111 : vector<8x1xf32>
      %113 = arith.mulf %109, %109 : vector<8x1xf32>
      %114 = arith.subf %112, %113 : vector<8x1xf32>
      %cst_69 = arith.constant 0.000000e+00 : f32
      %115 = vector.broadcast %cst_69 : f32 to vector<8x1xf32>
      %116 = arith.maximumf %114, %115 : vector<8x1xf32>
      %c0_70 = arith.constant 0 : index
      %c0_71 = arith.constant 0 : index
      %c0_72 = arith.constant 0 : index
      %117 = vector.load %arg6[%c0_70, %c0_71, %c0_72] : memref<1x8x2xf32, #tpu.memory_space<vmem>>, vector<1x8x1xf32>
      %118 = vector.shape_cast %117 : vector<1x8x1xf32> to vector<8x1xf32>
      %119 = vector.shape_cast %109 : vector<8x1xf32> to vector<1x8x1xf32>
      tpu.vector_store %arg6[%c0_70, %c0_71, %c0_72], %119 {strides = array<i32>} : memref<1x8x2xf32, #tpu.memory_space<vmem>>, vector<1x8x1xf32>,
      %cst_73 = arith.constant 9.99999974E-6 : f32
      %120 = vector.broadcast %cst_73 : f32 to vector<8x1xf32>
      %121 = arith.addf %116, %120 : vector<8x1xf32>
      %122 = math.rsqrt %121 : vector<8x1xf32>
      %c0_74 = arith.constant 0 : index
      %c0_75 = arith.constant 0 : index
      %c1 = arith.constant 1 : index
      %123 = vector.load %arg6[%c0_74, %c0_75, %c1] : memref<1x8x2xf32, #tpu.memory_space<vmem>>, vector<1x8x1xf32>
      %124 = vector.shape_cast %123 : vector<1x8x1xf32> to vector<8x1xf32>
      %125 = vector.shape_cast %122 : vector<8x1xf32> to vector<1x8x1xf32>
      tpu.vector_store %arg6[%c0_74, %c0_75, %c1], %125 {strides = array<i32>} : memref<1x8x2xf32, #tpu.memory_space<vmem>>, vector<1x8x1xf32>,
    } else {
    }
    return
  }
  func.func @transform_1(%arg0: i32, %arg1: i32) -> (i32, i32) {
    %c0_i32 = arith.constant 0 : i32
    %c0_i32_0 = arith.constant 0 : i32
    %c0_i32_1 = arith.constant 0 : i32
    return %c0_i32, %c0_i32_0 : i32, i32
  }
  func.func @transform_2(%arg0: i32, %arg1: i32) -> (i32, i32) {
    %c0_i32 = arith.constant 0 : i32
    %c0_i32_0 = arith.constant 0 : i32
    return %c0_i32, %arg1 : i32, i32
  }
  func.func @transform_3(%arg0: i32, %arg1: i32) -> (i32, i32, i32) {
    %c1_i32 = arith.constant 1 : i32
    %0 = arith.addi %arg1, %c1_i32 : i32
    %c0_i32 = arith.constant 0 : i32
    %c0_i32_0 = arith.constant 0 : i32
    return %arg0, %c0_i32, %0 : i32, i32, i32
  }
  func.func @transform_4(%arg0: i32, %arg1: i32) -> (i32, i32, i32) {
    %c0_i32 = arith.constant 0 : i32
    %c0_i32_0 = arith.constant 0 : i32
    %c0_i32_1 = arith.constant 0 : i32
    return %arg0, %c0_i32, %c0_i32_0 : i32, i32, i32
  }
}

</mosaic_0001>

<llo_original>
// kernel: tpu_custom_call.1
$region0: #{tpu_custom_call.1}
  #allocation0 [shape = 'u32[]', space=smem, size = 0x4, offset = 0x4, fixed_abs, tag = 'smem constant byte address 0x4 - core index']
  #allocation1 [shape = 'u32[144,128]{1,0:T(1,128)}', space=vmem, size = 0x12000, scoped, tag = 'internal scratch']
  #allocation2 [shape = 'bf16[2,4,1280]{2,1,0:T(4,128)(2,1)}', space=vmem, size = 0x5000, scoped, tag = 'scratch operand']
  #allocation3 [shape = 's32[4]{0}', space=sflag, size = 0x10, scoped, tag = 'scratch operand']
  #allocation4 [shape = 'bf16[108,1024]{1,0:T(8,128)(2,1)}', space=vmem, size = 0x38000, scoped, tag = 'scratch operand']
  #allocation5 [shape = 'f32[8,1]{1,0:T(8,128)}', space=vmem, size = 0x1000, scoped, tag = 'scratch operand']
  #allocation6 [shape = 'f32[8,1]{1,0:T(8,128)}', space=vmem, size = 0x1000, scoped, tag = 'scratch operand']
  #allocation13 [shape = 's32[]', space=sflag, size = 0x4, offset = 0, fixed_abs, tag = 'sflag constant byte address 0x0 - dummy sync flag']
  #allocation14 [shape = 's32[]', space=sflag, size = 0x4, offset = 0, fixed_abs, tag = 'sflag constant byte address 0x0 - dummy sync flag']
  #allocation15 [shape = 'u32[]', space=smem, size = 0x4, offset = 0x44, fixed_abs, tag = 'smem constant byte address 0x44 - assertion arg 0']
  #allocation16 [shape = 'u32[]', space=smem, size = 0x4, offset = 0x48, fixed_abs, tag = 'smem constant byte address 0x48 - assertion arg 1']
  #allocation17 [shape = 's32[]', space=sflag, size = 0x4, offset = 0, fixed_abs, tag = 'sflag constant byte address 0x0 - dummy sync flag']
  #allocation18 [shape = 's32[]', space=sflag, size = 0x4, offset = 0, fixed_abs, tag = 'sflag constant byte address 0x0 - dummy sync flag']
  %s0 = inlined_call_operand.hbm [shape: bf16[2,4,3072], index: 0, kind: input, shape index: {}]
  %s1 = inlined_call_operand.hbm [shape: bf16[8,108], index: 1, kind: input, shape index: {}]
  %s2 = inlined_call_operand.hbm [shape: f32[1,1024], index: 2, kind: input, shape index: {}]
  %s3 = inlined_call_operand.hbm [shape: bf16[2,8,3072], index: 3, kind: output, shape index: {0}]
  %s4 = inlined_call_operand.vmem [shape: f32[2,8,2], index: 4, kind: output, shape index: {1}]
  %5 = xla_tuple %s3, %s4
  %s6 = sld [smem:[#allocation0]]
  $region77: #{tpu_custom_call.1} parent=0
    _
  %s8 = ssub.s32 1, %s6
  %s9 = scalar_select 0, %s8, %s6
  $region1: #{tpu_custom_call.1} parent=0
    #allocation7 [shape = 'u8[2048]{0}', space=vmem, size = 0x800, scoped, tag = 'input window, operand 1, single buffered']
    #allocation8 [shape = 's32[2]{0}', space=sflag, size = 0x8, scoped, tag = 'scoped memory for tpu_custom_call.1']
    #allocation9 [shape = 's32[2]{0}', space=sflag, size = 0x8, scoped, tag = 'scoped memory for tpu_custom_call.1']
    #allocation10 [shape = 'u8[4096]{0}', space=vmem, size = 0x1000, scoped, tag = 'input window, operand 2, single buffered']
    #allocation11 [shape = 's32[1]{0}', space=sflag, size = 0x4, scoped, tag = 'scoped memory for tpu_custom_call.1']
    #allocation12 [shape = 'u8[32768]{0}', space=vmem, size = 0x8000, scoped, tag = 'output window, operand 0']
    %10 = vsyncpa [#allocation8], 0
    %11 = vsyncpa [#allocation11], 0
    %12 = vsyncpa [#allocation9], 0
    %s13 = scalar_lea.sflag [#allocation9], 1
    %14 = vsyncpa %s13, 0
    loop: start=0, step=1, limit=4
    $region2: #{tpu_custom_call.1} parent=1 // loop_pre_header
      _
    $region3: #{tpu_custom_call.1} parent=1 // loop_header
      %s16 = sphi 0, %s20
      %p17 = scmp.ge.s32.totalorder %s16, 4
      %s23 = sphi 0, %s35
      %s24 = sphi 0, %s31
      %s25 = sphi 0, %s23
      %s26 = sphi 0, %s24
      %s27 = sphi 0, %s25
      %s28 = sphi 0, %s26
      %s36 = sphi 0, %s36
      %s38 = sphi 0, %s36
      %s39 = sphi 0, %s38
      %s53 = sphi 0, %s39
      %s59 = sphi 0, %s61
      %s62 = sphi 0, %s59
      %s63 = sphi 0, %s62
      %s79 = sphi 0, %s63
      %s89 = sphi 0, %s91
      %s92 = sphi 0, %s89
      %s93 = sphi 0, %s92
      %s109 = sphi 0, %s93
      %s115 = sphi 0, %s117
      %s118 = sphi 0, %s115
      %s119 = sphi 0, %s118
      %s135 = sphi 0, %s119
    $region4: #{tpu_custom_call.1} parent=1 // loop_header_branch
      %19 = sbr.rel (%p17) target = $region8
    $region5: #{tpu_custom_call.1} parent=1 // loop_body
      %s21 = ssub.s32 %s16, 1
      %s22 = ssub.s32 %s16, 2
      %s29 = sadd.s32 1, %s24
      %p30 = scmp.ge.s32.totalorder %s29, 1
      %s31 = scalar_select %p30, 0, %s29
      %s32 = sadd.s32 1, %s23
      %s33 = scalar_select %p30, %s32, %s23
      %p34 = scmp.ge.s32.totalorder %s33, 2
      %s35 = scalar_select %p34, 0, %s33
      %s37 = sadd.s32 %s36, 1
      %p40 = scmp.eq.s32.totalorder %s16, 1
      %p41 = scmp.ne.s32.totalorder %s36, %s38
      %p42 = scmp.eq.s32.totalorder %s16, 0
      %p43 = por %p41, %p42
      %p44 = scmp.ne.s32.totalorder %s36, %s38
      %p45 = scmp.eq.s32.totalorder %s21, 1
      %p46 = por %p44, %p45
      %p47 = scmp.ne.s32.totalorder %s38, %s39
      %p48 = scmp.eq.s32.totalorder %s21, 0
      %p49 = por %p47, %p48
      %p50 = scmp.ne.s32.totalorder %s38, %s39
      %p51 = scmp.eq.s32.totalorder %s22, 1
      %p52 = por %p50, %p51
      %p54 = scmp.ne.s32.totalorder %s39, %s53
      %p55 = scmp.eq.s32.totalorder %s22, 0
      %p56 = por %p54, %p55
      %s57 = ssub.s32 %s24, %s31
      %p58 = scmp.eq.s32.totalorder %s57, 0
      %s60 = sadd.s32 %s59, 1
      %s61 = scalar_select %p58, %s59, %s60
      %p64 = pneg %p58
      %p65 = scmp.eq.s32.totalorder %s16, 1
      %p66 = por %p64, %p65
      %p67 = scmp.ne.s32.totalorder %s59, %s62
      %p68 = scmp.eq.s32.totalorder %s16, 0
      %p69 = por %p67, %p68
      %p70 = scmp.ne.s32.totalorder %s59, %s62
      %p71 = scmp.eq.s32.totalorder %s21, 1
      %p72 = por %p70, %p71
      %p73 = scmp.ne.s32.totalorder %s62, %s63
      %p74 = scmp.eq.s32.totalorder %s21, 0
      %p75 = por %p73, %p74
      %p76 = scmp.ne.s32.totalorder %s62, %s63
      %p77 = scmp.eq.s32.totalorder %s22, 1
      %p78 = por %p76, %p77
      %p80 = scmp.ne.s32.totalorder %s63, %s79
      %p81 = scmp.eq.s32.totalorder %s22, 0
      %p82 = por %p80, %p81
      %s83 = sadd.s32 %s24, 1
      %s84 = sadd.s32 %s31, 1
      %s85 = ssub.s32 %s23, %s35
      %s86 = ssub.s32 %s83, %s84
      %s87 = sor.u32 %s85, %s86
      %p88 = scmp.eq.s32.totalorder %s87, 0
      %s90 = sadd.s32 %s89, 1
      %s91 = scalar_select %p88, %s89, %s90
      %p94 = pneg %p88
      %p95 = scmp.eq.s32.totalorder %s16, 1
      %p96 = por %p94, %p95
      %p97 = scmp.ne.s32.totalorder %s89, %s92
      %p98 = scmp.eq.s32.totalorder %s16, 0
      %p99 = por %p97, %p98
      %p100 = scmp.ne.s32.totalorder %s89, %s92
      %p101 = scmp.eq.s32.totalorder %s21, 1
      %p102 = por %p100, %p101
      %p103 = scmp.ne.s32.totalorder %s92, %s93
      %p104 = scmp.eq.s32.totalorder %s21, 0
      %p105 = por %p103, %p104
      %p106 = scmp.ne.s32.totalorder %s92, %s93
      %p107 = scmp.eq.s32.totalorder %s22, 1
      %p108 = por %p106, %p107
      %p110 = scmp.ne.s32.totalorder %s93, %s109
      %p111 = scmp.eq.s32.totalorder %s22, 0
      %p112 = por %p110, %p111
      %s113 = ssub.s32 %s23, %s35
      %p114 = scmp.eq.s32.totalorder %s113, 0
      %s116 = sadd.s32 %s115, 1
      %s117 = scalar_select %p114, %s115, %s116
      %p120 = pneg %p114
      %p121 = scmp.eq.s32.totalorder %s16, 1
      %p122 = por %p120, %p121
      %p123 = scmp.ne.s32.totalorder %s115, %s118
      %p124 = scmp.eq.s32.totalorder %s16, 0
      %p125 = por %p123, %p124
      %p126 = scmp.ne.s32.totalorder %s115, %s118
      %p127 = scmp.eq.s32.totalorder %s21, 1
      %p128 = por %p126, %p127
      %p129 = scmp.ne.s32.totalorder %s118, %s119
      %p130 = scmp.eq.s32.totalorder %s21, 0
      %p131 = por %p129, %p130
      %p132 = scmp.ne.s32.totalorder %s118, %s119
      %p133 = scmp.eq.s32.totalorder %s22, 1
      %p134 = por %p132, %p133
      %p136 = scmp.ne.s32.totalorder %s119, %s135
      %p137 = scmp.eq.s32.totalorder %s22, 0
      %p138 = por %p136, %p137
      %p139 = scmp.le.s32.totalorder 1, %s16
      %p140 = scmp.lt.s32.totalorder %s16, 3
      %p141 = pnand %p139, %p140
      %p142 = pneg %p141
      // Predicated region
      $region9: #{tpu_custom_call.1} parent=5 // pred_check
        _
      $region10: #{tpu_custom_call.1} parent=5 // pred_check_branch
        %144 = sbr.rel (%p141) target = $region12
      $region11: #{tpu_custom_call.1} parent=5 // pred_region
        %s145 = ssub.s32 %s16, 1
        // Predicated region
        $region13: #{tpu_custom_call.1} parent=11 // pred_check
          %p146 = pneg %p49
        $region14: #{tpu_custom_call.1} parent=11 // pred_check_branch
          %148 = sbr.rel (%p146) target = $region16
        $region15: #{tpu_custom_call.1} parent=11 // pred_region
          %s150 = ssub.s32 64, 64
          %151 = vsyncadd [#allocation8], %s150
          %s153 = sshll.u32 [#allocation7], 4
          %s154 = int_to_ptr.vmem [resolvable:$true] %s153
          %156 = dma.hbm_to_vmem [thread:$0]  %s1, 64, %s154, [#allocation8]
        $region16: #{tpu_custom_call.1} parent=11 // pred_fallthru
          _
        // Predicated region
        $region17: #{tpu_custom_call.1} parent=11 // pred_check
          %p157 = pneg %p75
        $region18: #{tpu_custom_call.1} parent=11 // pred_check_branch
          %159 = sbr.rel (%p157) target = $region20
        $region19: #{tpu_custom_call.1} parent=11 // pred_region
          %s160 = smul.u32 8, %s26
          %s162 = ssub.s32 128, 128
          %163 = vsyncadd [#allocation11], %s162
          %s164 = smul.addr %s160, 16
          %s165 = scalar_lea.hbm %s2, %s164
          %s167 = sshll.u32 [#allocation10], 4
          %s168 = int_to_ptr.vmem [resolvable:$true] %s167
          %170 = dma.hbm_to_vmem [thread:$0]  %s165, 128, %s168, [#allocation11]
        $region20: #{tpu_custom_call.1} parent=11 // pred_fallthru
          _
      $region12: #{tpu_custom_call.1} parent=5 // pred_fallthru
        _
      %p171 = scmp.lt.s32.totalorder %s16, 2
      // Predicated region
      $region21: #{tpu_custom_call.1} parent=5 // pred_check
        %p172 = pneg %p171
      $region22: #{tpu_custom_call.1} parent=5 // pred_check_branch
        %174 = sbr.rel (%p172) target = $region24
      $region23: #{tpu_custom_call.1} parent=5 // pred_region
        _
      $region24: #{tpu_custom_call.1} parent=5 // pred_fallthru
        _
      %p175 = scmp.le.s32.totalorder 1, %s16
      %p176 = scmp.lt.s32.totalorder %s16, 3
      %p177 = pnand %p175, %p176
      %p178 = pneg %p177
      // Predicated region
      $region25: #{tpu_custom_call.1} parent=5 // pred_check
        _
      $region26: #{tpu_custom_call.1} parent=5 // pred_check_branch
        %180 = sbr.rel (%p177) target = $region28
      $region27: #{tpu_custom_call.1} parent=5 // pred_region
        %s181 = ssub.s32 %s16, 1
        // Predicated region
        $region29: #{tpu_custom_call.1} parent=27 // pred_check
          %p182 = pneg %p49
        $region30: #{tpu_custom_call.1} parent=27 // pred_check_branch
          %184 = sbr.rel (%p182) target = $region32
        $region31: #{tpu_custom_call.1} parent=27 // pred_region
          %185 = dma.done [#allocation8], 64
        $region32: #{tpu_custom_call.1} parent=27 // pred_fallthru
          _
        // Predicated region
        $region33: #{tpu_custom_call.1} parent=27 // pred_check
          %p186 = pneg %p75
        $region34: #{tpu_custom_call.1} parent=27 // pred_check_branch
          %188 = sbr.rel (%p186) target = $region36
        $region35: #{tpu_custom_call.1} parent=27 // pred_region
          %189 = dma.done [#allocation11], 128
        $region36: #{tpu_custom_call.1} parent=27 // pred_fallthru
          _
        %p190 = pneg %p49
        %p191 = pneg %p46
        %p192 = pneg %p75
        %p193 = pneg %p72
        %p194 = pneg %p105
        %p195 = pneg %p102
        %s196 = sand.u32 %s92, 1
        %s197 = scalar_lea.sflag [#allocation9], %s196
        %s198 = sand.u32 %s92, 1
        %s199 = smul.addr %s198, 32
        %s200 = scalar_lea.vmem [#allocation12], %s199
        %p201 = pneg %p131
        %p202 = pneg %p128
        %p203 = scmp.lt.s32.totalorder %s25, 1
        %s204 = scalar_select %p203, %s25, 1
        %s205 = smul.addr %s204, 8
        %s206 = scalar_lea.vmem %s4, %s205
        %s207 = smul.u32 8, %s26
        %s208 = sadd.s32 %s26, 1
        %s209 = smul.u32 8, %s208
        %p210 = scmp.lt.s32.totalorder %s25, 1
        %s211 = scalar_select %p210, %s25, 1
        %s212 = smul.addr %s211, 8
        %s213 = scalar_lea.vmem %s4, %s212
        %p215 = scmp.lt.s32.totalorder %s26, 0
        %s216 = ssub.s32 0, %s26
        %s217 = scalar_select %p215, %s216, %s26
        %s218 = sand.u32 %s217, 1
        %s219 = ssub.s32 0, %s218
        %s220 = scalar_select %p215, %s219, %s218
        %p221 = scmp.ne.s32.totalorder %s220, 0
        %p222 = scmp.lt.s32.totalorder %s220, 0
        %p223 = pnand %p222, %p221
        %p224 = pneg %p223
        %s225 = sadd.s32 %s220, 2
        %s226 = scalar_select %p224, %s225, %s220
        %p227 = scmp.eq.s32.totalorder %s26, 0
        // Predicated region
        $region37: #{tpu_custom_call.1} parent=27 // pred_check
          %p228 = pneg %p227
        $region38: #{tpu_custom_call.1} parent=27 // pred_check_branch
          %230 = sbr.rel (%p228) target = $region40
        $region39: #{tpu_custom_call.1} parent=27 // pred_region
          %vm231 = vcmask 7168
          %232 = vst.msk [vmem:[#allocation5] sm:$0xff] %vm231, 0.0
          %233 = vst.msk [vmem:[#allocation6] sm:$0xff] %vm231, 0.0
          %s234 = smul.u32 %s25, 24
          %s235 = sadd.s32 7, %s234
          %s236 = smul.addr %s235, 32
          %s237 = scalar_lea.hbm %s0, %s236
          // Predicated region
          $region41: #{tpu_custom_call.1} parent=39 // pred_check
            _
          $region42: #{tpu_custom_call.1} parent=39 // pred_check_branch
            %239 = sbr.rel target = $region44
          $region43: #{tpu_custom_call.1} parent=39 // pred_region
            %240 = sst [smem:[#allocation15]] [#allocation14]
            %241 = sst [smem:[#allocation16]] [#allocation13]
          $region44: #{tpu_custom_call.1} parent=39 // pred_fallthru
            _
          %243 = shalt.err (0)
          %s245 = sshll.u32 [#allocation2], 4
          %s246 = int_to_ptr.vmem [resolvable:$true] %s245
          %248 = dma.hbm_to_vmem [thread:$0]  %s237, 320, %s246, [#allocation3]
        $region40: #{tpu_custom_call.1} parent=27 // pred_fallthru
          _
        %s249 = sadd.s32 %s26, 1
        %s250 = smul.u32 %s226, 10
        %s251 = smul.addr %s250, 2
        %s252 = scalar_lea.vmem [#allocation2], %s251
        %s253 = scalar_lea.sflag [#allocation3], %s226
        %s254 = smul.u32 2, 1
        %s255 = smul.u32 %s254, 10
        %s256 = sshll.u32 %s255, 4
        %257 = dma.done %s253, %s256
        %p258 = scmp.lt.s32.totalorder %s249, 1
        // Predicated region
        $region45: #{tpu_custom_call.1} parent=27 // pred_check
          %p259 = pneg %p258
        $region46: #{tpu_custom_call.1} parent=27 // pred_check_branch
          %261 = sbr.rel (%p259) target = $region48
        $region47: #{tpu_custom_call.1} parent=27 // pred_region
          %s262 = ssub.s32 1, %s226
          %s263 = sadd.s32 %s26, 2
          %s264 = smul.u32 %s263, 1024
          %s265 = ssub.s32 %s264, 128
          %s266 = sshra.s32 %s265, 7
          %s267 = sand.u32 %s265, 127
          %s268 = smul.u32 %s25, 24
          %s269 = sadd.s32 %s266, %s268
          %s270 = smul.addr %s269, 32
          %s271 = scalar_lea.hbm %s0, %s270
          %s272 = smul.u32 %s262, 10
          %s273 = smul.addr %s272, 2
          %s274 = scalar_lea.vmem [#allocation2], %s273
          %s275 = scalar_lea.sflag [#allocation3], %s262
          // Predicated region
          $region49: #{tpu_custom_call.1} parent=47 // pred_check
            _
          $region50: #{tpu_custom_call.1} parent=47 // pred_check_branch
            %277 = sbr.rel target = $region52
          $region51: #{tpu_custom_call.1} parent=47 // pred_region
            %278 = sst [smem:[#allocation15]] [#allocation18]
            %279 = sst [smem:[#allocation16]] [#allocation17]
          $region52: #{tpu_custom_call.1} parent=47 // pred_fallthru
            _
          %281 = shalt.err (0)
          %s283 = sshll.u32 %s274, 4
          %s284 = int_to_ptr.vmem [resolvable:$true] %s283
          %286 = dma.hbm_to_vmem [thread:$0]  %s271, 320, %s284, %s275
        $region48: #{tpu_custom_call.1} parent=27 // pred_fallthru
          _
        %v287 = vld [vmem:[%s252] sm:$0xff]
        %v288 = vld [vmem:[%s252 + $0x8] sm:$0xff]
        %v289 = vld [vmem:[%s252 + $0x10] sm:$0xf]
        %v293 = vcombine.high %v287, %v287
        %v295 = vunpack.c.l.s4 1983009808
        %v296 = vunpack.c.0.s8 %v295
        %v297 = vlaneseq
        %v298 = vshrl.u32 %v297, 7
        %v299 = vsub.s32 %v296, %v298
        %v300 = vrot.slane %v287, %v299
        %v302 = vunpack.c.l.s4 1983009808
        %v303 = vunpack.c.0.s8 %v302
        %v304 = vlaneseq
        %v305 = vshrl.u32 %v304, 7
        %v306 = vsub.s32 %v303, %v305
        %v307 = vrot.slane %v293, %v306
        %v308 = vcombine.high %v288, %v288
        %v310 = vunpack.c.l.s4 1983009808
        %v311 = vunpack.c.0.s8 %v310
        %v312 = vlaneseq
        %v313 = vshrl.u32 %v312, 7
        %v314 = vsub.s32 %v311, %v313
        %v315 = vrot.slane %v288, %v314
        %v317 = vunpack.c.l.s4 1983009808
        %v318 = vunpack.c.0.s8 %v317
        %v319 = vlaneseq
        %v320 = vshrl.u32 %v319, 7
        %v321 = vsub.s32 %v318, %v320
        %v322 = vrot.slane %v308, %v321
        %v324 = vunpack.c.l.s4 1983009808
        %v325 = vunpack.c.0.s8 %v324
        %v326 = vlaneseq
        %v327 = vshrl.u32 %v326, 7
        %v328 = vsub.s32 %v325, %v327
        %v329 = vrot.slane %v289, %v328
        %330 = vrot.lane.b32.xlu0 %v300, 111
        %v331 = vpop.permute.xlu0 %330
        %332 = vrot.lane.b32.xlu0 %v307, 111
        %v333 = vpop.permute.xlu0 %332
        %334 = vrot.lane.b32.xlu0 %v315, 111
        %v335 = vpop.permute.xlu0 %334
        %336 = vrot.lane.b32.xlu0 %v322, 111
        %v337 = vpop.permute.xlu0 %336
        %338 = vrot.lane.b32.xlu0 %v329, 111
        %v339 = vpop.permute.xlu0 %338
        %v340 = vrot.slane %v331, 4
        %v341 = vrot.slane %v333, 4
        %v342 = vrot.slane %v335, 4
        %v343 = vrot.slane %v337, 4
        %v344 = vrot.slane %v339, 4
        %vm345 = vcmask 1043456
        %v346 = vsel %vm345, %v340, %v341
        %vm347 = vcmask 908288
        %v348 = vsel %vm347, %v331, %v346
        %v349 = vsel %vm345, %v341, %v342
        %v350 = vsel %vm347, %v333, %v349
        %v351 = vsel %vm345, %v342, %v343
        %v352 = vsel %vm347, %v335, %v351
        %v353 = vsel %vm345, %v343, %v344
        %v354 = vsel %vm347, %v337, %v353
        %359 = vst [vmem:[#allocation4] sm:$0x33] %v348
        %360 = vst [vmem:[#allocation4 + $0x8] sm:$0x33] %v350
        %361 = vst [vmem:[#allocation4 + $0x10] sm:$0x33] %v352
        %362 = vst [vmem:[#allocation4 + $0x18] sm:$0x33] %v354
        %v363 = vcombine.low %v287, %v287
        %v365 = vunpack.c.l.s4 1983009808
        %v366 = vunpack.c.0.s8 %v365
        %v367 = vlaneseq
        %v368 = vshrl.u32 %v367, 7
        %v369 = vsub.s32 %v366, %v368
        %v370 = vrot.slane %v363, %v369
        %v371 = vcombine.low %v288, %v288
        %v373 = vunpack.c.l.s4 1983009808
        %v374 = vunpack.c.0.s8 %v373
        %v375 = vlaneseq
        %v376 = vshrl.u32 %v375, 7
        %v377 = vsub.s32 %v374, %v376
        %v378 = vrot.slane %v371, %v377
        %v379 = vcombine.low %v289, %v289
        %v381 = vunpack.c.l.s4 1983009808
        %v382 = vunpack.c.0.s8 %v381
        %v383 = vlaneseq
        %v384 = vshrl.u32 %v383, 7
        %v385 = vsub.s32 %v382, %v384
        %v386 = vrot.slane %v379, %v385
        %387 = vrot.lane.b32.xlu0 %v370, 110
        %v388 = vpop.permute.xlu0 %387
        %389 = vrot.lane.b32.xlu0 %v300, 110
        %v390 = vpop.permute.xlu0 %389
        %391 = vrot.lane.b32.xlu0 %v378, 110
        %v392 = vpop.permute.xlu0 %391
        %393 = vrot.lane.b32.xlu0 %v315, 110
        %v394 = vpop.permute.xlu0 %393
        %395 = vrot.lane.b32.xlu0 %v386, 110
        %v396 = vpop.permute.xlu0 %395
        %v397 = vrot.slane %v388, 4
        %v398 = vrot.slane %v390, 4
        %v399 = vrot.slane %v392, 4
        %v400 = vrot.slane %v394, 4
        %v401 = vrot.slane %v396, 4
        %v402 = vsel %vm345, %v397, %v398
        %vm403 = vcmask 900096
        %v404 = vsel %vm403, %v388, %v402
        %v405 = vsel %vm345, %v398, %v399
        %v406 = vsel %vm403, %v390, %v405
        %v407 = vsel %vm345, %v399, %v400
        %v408 = vsel %vm403, %v392, %v407
        %v409 = vsel %vm345, %v400, %v401
        %v410 = vsel %vm403, %v394, %v409
        %415 = vst [vmem:[#allocation4] sm:$0xcc] %v404
        %416 = vst [vmem:[#allocation4 + $0x8] sm:$0xcc] %v406
        %417 = vst [vmem:[#allocation4 + $0x10] sm:$0xcc] %v408
        %418 = vst [vmem:[#allocation4 + $0x18] sm:$0xcc] %v410
        %419 = vrot.lane.b32.xlu0 %v300, 109
        %v420 = vpop.permute.xlu0 %419
        %421 = vrot.lane.b32.xlu0 %v307, 109
        %v422 = vpop.permute.xlu0 %421
        %423 = vrot.lane.b32.xlu0 %v315, 109
        %v424 = vpop.permute.xlu0 %423
        %425 = vrot.lane.b32.xlu0 %v322, 109
        %v426 = vpop.permute.xlu0 %425
        %427 = vrot.lane.b32.xlu0 %v329, 109
        %v428 = vpop.permute.xlu0 %427
        %v429 = vrot.slane %v420, 4
        %v430 = vrot.slane %v422, 4
        %v431 = vrot.slane %v424, 4
        %v432 = vrot.slane %v426, 4
        %v433 = vrot.slane %v428, 4
        %v434 = vsel %vm345, %v429, %v430
        %vm435 = vcmask 891904
        %v436 = vsel %vm435, %v420, %v434
        %v437 = vsel %vm345, %v430, %v431
        %v438 = vsel %vm435, %v422, %v437
        %v439 = vsel %vm345, %v431, %v432
        %v440 = vsel %vm435, %v424, %v439
        %v441 = vsel %vm345, %v432, %v433
        %v442 = vsel %vm435, %v426, %v441
        %447 = vst [vmem:[#allocation4 + $0x20] sm:$0x33] %v436
        %448 = vst [vmem:[#allocation4 + $0x28] sm:$0x33] %v438
        %449 = vst [vmem:[#allocation4 + $0x30] sm:$0x33] %v440
        %450 = vst [vmem:[#allocation4 + $0x38] sm:$0x33] %v442
        %451 = vrot.lane.b32.xlu0 %v370, 101
        %v452 = vpop.permute.xlu0 %451
        %453 = vrot.lane.b32.xlu0 %v300, 101
        %v454 = vpop.permute.xlu0 %453
        %455 = vrot.lane.b32.xlu0 %v378, 101
        %v456 = vpop.permute.xlu0 %455
        %457 = vrot.lane.b32.xlu0 %v315, 101
        %v458 = vpop.permute.xlu0 %457
        %459 = vrot.lane.b32.xlu0 %v386, 101
        %v460 = vpop.permute.xlu0 %459
        %v461 = vrot.slane %v452, 4
        %v462 = vrot.slane %v454, 4
        %v463 = vrot.slane %v456, 4
        %v464 = vrot.slane %v458, 4
        %v465 = vrot.slane %v460, 4
        %v466 = vsel %vm345, %v461, %v462
        %vm467 = vcmask 826368
        %v468 = vsel %vm467, %v452, %v466
        %v469 = vsel %vm345, %v462, %v463
        %v470 = vsel %vm467, %v454, %v469
        %v471 = vsel %vm345, %v463, %v464
        %v472 = vsel %vm467, %v456, %v471
        %v473 = vsel %vm345, %v464, %v465
        %v474 = vsel %vm467, %v458, %v473
        %479 = vst [vmem:[#allocation4 + $0x20] sm:$0xcc] %v468
        %480 = vst [vmem:[#allocation4 + $0x28] sm:$0xcc] %v470
        %481 = vst [vmem:[#allocation4 + $0x30] sm:$0xcc] %v472
        %482 = vst [vmem:[#allocation4 + $0x38] sm:$0xcc] %v474
        %483 = vrot.lane.b32.xlu0 %v300, 100
        %v484 = vpop.permute.xlu0 %483
        %485 = vrot.lane.b32.xlu0 %v307, 100
        %v486 = vpop.permute.xlu0 %485
        %487 = vrot.lane.b32.xlu0 %v315, 100
        %v488 = vpop.permute.xlu0 %487
        %489 = vrot.lane.b32.xlu0 %v322, 100
        %v490 = vpop.permute.xlu0 %489
        %491 = vrot.lane.b32.xlu0 %v329, 100
        %v492 = vpop.permute.xlu0 %491
        %v493 = vrot.slane %v484, 4
        %v494 = vrot.slane %v486, 4
        %v495 = vrot.slane %v488, 4
        %v496 = vrot.slane %v490, 4
        %v497 = vrot.slane %v492, 4
        %v498 = vsel %vm345, %v493, %v494
        %vm499 = vcmask 818176
        %v500 = vsel %vm499, %v484, %v498
        %v501 = vsel %vm345, %v494, %v495
        %v502 = vsel %vm499, %v486, %v501
        %v503 = vsel %vm345, %v495, %v496
        %v504 = vsel %vm499, %v488, %v503
        %v505 = vsel %vm345, %v496, %v497
        %v506 = vsel %vm499, %v490, %v505
        %511 = vst [vmem:[#allocation4 + $0x40] sm:$0x33] %v500
        %512 = vst [vmem:[#allocation4 + $0x48] sm:$0x33] %v502
        %513 = vst [vmem:[#allocation4 + $0x50] sm:$0x33] %v504
        %514 = vst [vmem:[#allocation4 + $0x58] sm:$0x33] %v506
        %515 = vrot.lane.b32.xlu0 %v370, 99
        %v516 = vpop.permute.xlu0 %515
        %517 = vrot.lane.b32.xlu0 %v300, 99
        %v518 = vpop.permute.xlu0 %517
        %519 = vrot.lane.b32.xlu0 %v378, 99
        %v520 = vpop.permute.xlu0 %519
        %521 = vrot.lane.b32.xlu0 %v315, 99
        %v522 = vpop.permute.xlu0 %521
        %523 = vrot.lane.b32.xlu0 %v386, 99
        %v524 = vpop.permute.xlu0 %523
        %v525 = vrot.slane %v516, 4
        %v526 = vrot.slane %v518, 4
        %v527 = vrot.slane %v520, 4
        %v528 = vrot.slane %v522, 4
        %v529 = vrot.slane %v524, 4
        %v530 = vsel %vm345, %v525, %v526
        %vm531 = vcmask 809984
        %v532 = vsel %vm531, %v516, %v530
        %v533 = vsel %vm345, %v526, %v527
        %v534 = vsel %vm531, %v518, %v533
        %v535 = vsel %vm345, %v527, %v528
        %v536 = vsel %vm531, %v520, %v535
        %v537 = vsel %vm345, %v528, %v529
        %v538 = vsel %vm531, %v522, %v537
        %543 = vst [vmem:[#allocation4 + $0x40] sm:$0xcc] %v532
        %544 = vst [vmem:[#allocation4 + $0x48] sm:$0xcc] %v534
        %545 = vst [vmem:[#allocation4 + $0x50] sm:$0xcc] %v536
        %546 = vst [vmem:[#allocation4 + $0x58] sm:$0xcc] %v538
        %547 = vrot.lane.b32.xlu0 %v300, 91
        %v548 = vpop.permute.xlu0 %547
        %549 = vrot.lane.b32.xlu0 %v307, 91
        %v550 = vpop.permute.xlu0 %549
        %551 = vrot.lane.b32.xlu0 %v315, 91
        %v552 = vpop.permute.xlu0 %551
        %553 = vrot.lane.b32.xlu0 %v322, 91
        %v554 = vpop.permute.xlu0 %553
        %555 = vrot.lane.b32.xlu0 %v329, 91
        %v556 = vpop.permute.xlu0 %555
        %v557 = vrot.slane %v548, 4
        %v558 = vrot.slane %v550, 4
        %v559 = vrot.slane %v552, 4
        %v560 = vrot.slane %v554, 4
        %v561 = vrot.slane %v556, 4
        %v562 = vsel %vm345, %v557, %v558
        %vm563 = vcmask 744448
        %v564 = vsel %vm563, %v548, %v562
        %v565 = vsel %vm345, %v558, %v559
        %v566 = vsel %vm563, %v550, %v565
        %v567 = vsel %vm345, %v559, %v560
        %v568 = vsel %vm563, %v552, %v567
        %v569 = vsel %vm345, %v560, %v561
        %v570 = vsel %vm563, %v554, %v569
        %575 = vst [vmem:[#allocation4 + $0x60] sm:$0x33] %v564
        %576 = vst [vmem:[#allocation4 + $0x68] sm:$0x33] %v566
        %577 = vst [vmem:[#allocation4 + $0x70] sm:$0x33] %v568
        %578 = vst [vmem:[#allocation4 + $0x78] sm:$0x33] %v570
        %579 = vrot.lane.b32.xlu0 %v370, 90
        %v580 = vpop.permute.xlu0 %579
        %581 = vrot.lane.b32.xlu0 %v300, 90
        %v582 = vpop.permute.xlu0 %581
        %583 = vrot.lane.b32.xlu0 %v378, 90
        %v584 = vpop.permute.xlu0 %583
        %585 = vrot.lane.b32.xlu0 %v315, 90
        %v586 = vpop.permute.xlu0 %585
        %587 = vrot.lane.b32.xlu0 %v386, 90
        %v588 = vpop.permute.xlu0 %587
        %v589 = vrot.slane %v580, 4
        %v590 = vrot.slane %v582, 4
        %v591 = vrot.slane %v584, 4
        %v592 = vrot.slane %v586, 4
        %v593 = vrot.slane %v588, 4
        %v594 = vsel %vm345, %v589, %v590
        %vm595 = vcmask 736256
        %v596 = vsel %vm595, %v580, %v594
        %v597 = vsel %vm345, %v590, %v591
        %v598 = vsel %vm595, %v582, %v597
        %v599 = vsel %vm345, %v591, %v592
        %v600 = vsel %vm595, %v584, %v599
        %v601 = vsel %vm345, %v592, %v593
        %v602 = vsel %vm595, %v586, %v601
        %607 = vst [vmem:[#allocation4 + $0x60] sm:$0xcc] %v596
        %608 = vst [vmem:[#allocation4 + $0x68] sm:$0xcc] %v598
        %609 = vst [vmem:[#allocation4 + $0x70] sm:$0xcc] %v600
        %610 = vst [vmem:[#allocation4 + $0x78] sm:$0xcc] %v602
        %611 = vrot.lane.b32.xlu0 %v300, 89
        %v612 = vpop.permute.xlu0 %611
        %613 = vrot.lane.b32.xlu0 %v307, 89
        %v614 = vpop.permute.xlu0 %613
        %615 = vrot.lane.b32.xlu0 %v315, 89
        %v616 = vpop.permute.xlu0 %615
        %617 = vrot.lane.b32.xlu0 %v322, 89
        %v618 = vpop.permute.xlu0 %617
        %619 = vrot.lane.b32.xlu0 %v329, 89
        %v620 = vpop.permute.xlu0 %619
        %v621 = vrot.slane %v612, 4
        %v622 = vrot.slane %v614, 4
        %v623 = vrot.slane %v616, 4
        %v624 = vrot.slane %v618, 4
        %v625 = vrot.slane %v620, 4
        %v626 = vsel %vm345, %v621, %v622
        %vm627 = vcmask 728064
        %v628 = vsel %vm627, %v612, %v626
        %v629 = vsel %vm345, %v622, %v623
        %v630 = vsel %vm627, %v614, %v629
        %v631 = vsel %vm345, %v623, %v624
        %v632 = vsel %vm627, %v616, %v631
        %v633 = vsel %vm345, %v624, %v625
        %v634 = vsel %vm627, %v618, %v633
        %639 = vst [vmem:[#allocation4 + $0x80] sm:$0x33] %v628
        %640 = vst [vmem:[#allocation4 + $0x88] sm:$0x33] %v630
        %641 = vst [vmem:[#allocation4 + $0x90] sm:$0x33] %v632
        %642 = vst [vmem:[#allocation4 + $0x98] sm:$0x33] %v634
        %643 = vrot.lane.b32.xlu0 %v370, 11
        %v644 = vpop.permute.xlu0 %643
        %645 = vrot.lane.b32.xlu0 %v300, 11
        %v646 = vpop.permute.xlu0 %645
        %647 = vrot.lane.b32.xlu0 %v378, 11
        %v648 = vpop.permute.xlu0 %647
        %649 = vrot.lane.b32.xlu0 %v315, 11
        %v650 = vpop.permute.xlu0 %649
        %651 = vrot.lane.b32.xlu0 %v386, 11
        %v652 = vpop.permute.xlu0 %651
        %v653 = vrot.slane %v644, 4
        %v654 = vrot.slane %v646, 4
        %v655 = vrot.slane %v648, 4
        %v656 = vrot.slane %v650, 4
        %v657 = vrot.slane %v652, 4
        %v658 = vsel %vm345, %v653, %v654
        %vm659 = vcmask 89088
        %v660 = vsel %vm659, %v644, %v658
        %v661 = vsel %vm345, %v654, %v655
        %v662 = vsel %vm659, %v646, %v661
        %v663 = vsel %vm345, %v655, %v656
        %v664 = vsel %vm659, %v648, %v663
        %v665 = vsel %vm345, %v656, %v657
        %v666 = vsel %vm659, %v650, %v665
        %671 = vst [vmem:[#allocation4 + $0x80] sm:$0xcc] %v660
        %672 = vst [vmem:[#allocation4 + $0x88] sm:$0xcc] %v662
        %673 = vst [vmem:[#allocation4 + $0x90] sm:$0xcc] %v664
        %674 = vst [vmem:[#allocation4 + $0x98] sm:$0xcc] %v666
        %675 = vrot.lane.b32.xlu0 %v300, 10
        %v676 = vpop.permute.xlu0 %675
        %677 = vrot.lane.b32.xlu0 %v307, 10
        %v678 = vpop.permute.xlu0 %677
        %679 = vrot.lane.b32.xlu0 %v315, 10
        %v680 = vpop.permute.xlu0 %679
        %681 = vrot.lane.b32.xlu0 %v322, 10
        %v682 = vpop.permute.xlu0 %681
        %683 = vrot.lane.b32.xlu0 %v329, 10
        %v684 = vpop.permute.xlu0 %683
        %v685 = vrot.slane %v676, 4
        %v686 = vrot.slane %v678, 4
        %v687 = vrot.slane %v680, 4
        %v688 = vrot.slane %v682, 4
        %v689 = vrot.slane %v684, 4
        %v690 = vsel %vm345, %v685, %v686
        %vm691 = vcmask 80896
        %v692 = vsel %vm691, %v676, %v690
        %v693 = vsel %vm345, %v686, %v687
        %v694 = vsel %vm691, %v678, %v693
        %v695 = vsel %vm345, %v687, %v688
        %v696 = vsel %vm691, %v680, %v695
        %v697 = vsel %vm345, %v688, %v689
        %v698 = vsel %vm691, %v682, %v697
        %703 = vst [vmem:[#allocation4 + $0xa0] sm:$0x33] %v692
        %704 = vst [vmem:[#allocation4 + $0xa8] sm:$0x33] %v694
        %705 = vst [vmem:[#allocation4 + $0xb0] sm:$0x33] %v696
        %706 = vst [vmem:[#allocation4 + $0xb8] sm:$0x33] %v698
        %707 = vrot.lane.b32.xlu0 %v370, 9
        %v708 = vpop.permute.xlu0 %707
        %709 = vrot.lane.b32.xlu0 %v300, 9
        %v710 = vpop.permute.xlu0 %709
        %711 = vrot.lane.b32.xlu0 %v378, 9
        %v712 = vpop.permute.xlu0 %711
        %713 = vrot.lane.b32.xlu0 %v315, 9
        %v714 = vpop.permute.xlu0 %713
        %715 = vrot.lane.b32.xlu0 %v386, 9
        %v716 = vpop.permute.xlu0 %715
        %v717 = vrot.slane %v708, 4
        %v718 = vrot.slane %v710, 4
        %v719 = vrot.slane %v712, 4
        %v720 = vrot.slane %v714, 4
        %v721 = vrot.slane %v716, 4
        %v722 = vsel %vm345, %v717, %v718
        %vm723 = vcmask 72704
        %v724 = vsel %vm723, %v708, %v722
        %v725 = vsel %vm345, %v718, %v719
        %v726 = vsel %vm723, %v710, %v725
        %v727 = vsel %vm345, %v719, %v720
        %v728 = vsel %vm723, %v712, %v727
        %v729 = vsel %vm345, %v720, %v721
        %v730 = vsel %vm723, %v714, %v729
        %735 = vst [vmem:[#allocation4 + $0xa0] sm:$0xcc] %v724
        %736 = vst [vmem:[#allocation4 + $0xa8] sm:$0xcc] %v726
        %737 = vst [vmem:[#allocation4 + $0xb0] sm:$0xcc] %v728
        %738 = vst [vmem:[#allocation4 + $0xb8] sm:$0xcc] %v730
        %739 = vrot.lane.b32.xlu0 %v300, 1
        %v740 = vpop.permute.xlu0 %739
        %741 = vrot.lane.b32.xlu0 %v307, 1
        %v742 = vpop.permute.xlu0 %741
        %743 = vrot.lane.b32.xlu0 %v315, 1
        %v744 = vpop.permute.xlu0 %743
        %745 = vrot.lane.b32.xlu0 %v322, 1
        %v746 = vpop.permute.xlu0 %745
        %747 = vrot.lane.b32.xlu0 %v329, 1
        %v748 = vpop.permute.xlu0 %747
        %v749 = vrot.slane %v740, 4
        %v750 = vrot.slane %v742, 4
        %v751 = vrot.slane %v744, 4
        %v752 = vrot.slane %v746, 4
        %v753 = vrot.slane %v748, 4
        %v754 = vsel %vm345, %v749, %v750
        %vm755 = vcmask 7168
        %v756 = vsel %vm755, %v740, %v754
        %v757 = vsel %vm345, %v750, %v751
        %v758 = vsel %vm755, %v742, %v757
        %v759 = vsel %vm345, %v751, %v752
        %v760 = vsel %vm755, %v744, %v759
        %v761 = vsel %vm345, %v752, %v753
        %v762 = vsel %vm755, %v746, %v761
        %767 = vst [vmem:[#allocation4 + $0xc0] sm:$0x33] %v756
        %768 = vst [vmem:[#allocation4 + $0xc8] sm:$0x33] %v758
        %769 = vst [vmem:[#allocation4 + $0xd0] sm:$0x33] %v760
        %770 = vst [vmem:[#allocation4 + $0xd8] sm:$0x33] %v762
        %v771 = vrot.slane %v370, 4
        %v772 = vrot.slane %v300, 4
        %v773 = vrot.slane %v378, 4
        %v774 = vrot.slane %v315, 4
        %v775 = vrot.slane %v386, 4
        %v776 = vsel %vm345, %v771, %v772
        %v777 = vsel %vm345, %v772, %v773
        %v778 = vsel %vm345, %v773, %v774
        %v779 = vsel %vm345, %v774, %v775
        %784 = vst [vmem:[#allocation4 + $0xc0] sm:$0xcc] %v776
        %785 = vst [vmem:[#allocation4 + $0xc8] sm:$0xcc] %v777
        %786 = vst [vmem:[#allocation4 + $0xd0] sm:$0xcc] %v778
        %787 = vst [vmem:[#allocation4 + $0xd8] sm:$0xcc] %v779
        %788 = vrot.lane.b32.xlu0 %v300, 127
        %v789 = vpop.permute.xlu0 %788
        %790 = vrot.lane.b32.xlu0 %v307, 127
        %v791 = vpop.permute.xlu0 %790
        %792 = vrot.lane.b32.xlu0 %v315, 127
        %v793 = vpop.permute.xlu0 %792
        %794 = vrot.lane.b32.xlu0 %v322, 127
        %v795 = vpop.permute.xlu0 %794
        %796 = vrot.lane.b32.xlu0 %v329, 127
        %v797 = vpop.permute.xlu0 %796
        %v798 = vrot.slane %v789, 4
        %v799 = vrot.slane %v791, 4
        %v800 = vrot.slane %v793, 4
        %v801 = vrot.slane %v795, 4
        %v802 = vrot.slane %v797, 4
        %v803 = vsel %vm345, %v798, %v799
        %vm804 = vcmask 1039360
        %v805 = vsel %vm804, %v803, %v791
        %v806 = vsel %vm345, %v799, %v800
        %v807 = vsel %vm804, %v806, %v793
        %v808 = vsel %vm345, %v800, %v801
        %v809 = vsel %vm804, %v808, %v795
        %v810 = vsel %vm345, %v801, %v802
        %v811 = vsel %vm804, %v810, %v797
        %816 = vst [vmem:[#allocation4 + $0xe0] sm:$0x33] %v805
        %817 = vst [vmem:[#allocation4 + $0xe8] sm:$0x33] %v807
        %818 = vst [vmem:[#allocation4 + $0xf0] sm:$0x33] %v809
        %819 = vst [vmem:[#allocation4 + $0xf8] sm:$0x33] %v811
        %820 = vrot.lane.b32.xlu0 %v370, 119
        %v821 = vpop.permute.xlu0 %820
        %822 = vrot.lane.b32.xlu0 %v300, 119
        %v823 = vpop.permute.xlu0 %822
        %824 = vrot.lane.b32.xlu0 %v378, 119
        %v825 = vpop.permute.xlu0 %824
        %826 = vrot.lane.b32.xlu0 %v315, 119
        %v827 = vpop.permute.xlu0 %826
        %828 = vrot.lane.b32.xlu0 %v386, 119
        %v829 = vpop.permute.xlu0 %828
        %v830 = vrot.slane %v821, 4
        %v831 = vrot.slane %v823, 4
        %v832 = vrot.slane %v825, 4
        %v833 = vrot.slane %v827, 4
        %v834 = vrot.slane %v829, 4
        %v835 = vsel %vm345, %v830, %v831
        %vm836 = vcmask 973824
        %v837 = vsel %vm836, %v835, %v823
        %v838 = vsel %vm345, %v831, %v832
        %v839 = vsel %vm836, %v838, %v825
        %v840 = vsel %vm345, %v832, %v833
        %v841 = vsel %vm836, %v840, %v827
        %v842 = vsel %vm345, %v833, %v834
        %v843 = vsel %vm836, %v842, %v829
        %848 = vst [vmem:[#allocation4 + $0xe0] sm:$0xcc] %v837
        %849 = vst [vmem:[#allocation4 + $0xe8] sm:$0xcc] %v839
        %850 = vst [vmem:[#allocation4 + $0xf0] sm:$0xcc] %v841
        %851 = vst [vmem:[#allocation4 + $0xf8] sm:$0xcc] %v843
        %852 = vrot.lane.b32.xlu0 %v300, 118
        %v853 = vpop.permute.xlu0 %852
        %854 = vrot.lane.b32.xlu0 %v307, 118
        %v855 = vpop.permute.xlu0 %854
        %856 = vrot.lane.b32.xlu0 %v315, 118
        %v857 = vpop.permute.xlu0 %856
        %858 = vrot.lane.b32.xlu0 %v322, 118
        %v859 = vpop.permute.xlu0 %858
        %860 = vrot.lane.b32.xlu0 %v329, 118
        %v861 = vpop.permute.xlu0 %860
        %v862 = vrot.slane %v853, 4
        %v863 = vrot.slane %v855, 4
        %v864 = vrot.slane %v857, 4
        %v865 = vrot.slane %v859, 4
        %v866 = vrot.slane %v861, 4
        %v867 = vsel %vm345, %v862, %v863
        %vm868 = vcmask 965632
        %v869 = vsel %vm868, %v867, %v855
        %v870 = vsel %vm345, %v863, %v864
        %v871 = vsel %vm868, %v870, %v857
        %v872 = vsel %vm345, %v864, %v865
        %v873 = vsel %vm868, %v872, %v859
        %v874 = vsel %vm345, %v865, %v866
        %v875 = vsel %vm868, %v874, %v861
        %880 = vst [vmem:[#allocation4 + $0x100] sm:$0x33] %v869
        %881 = vst [vmem:[#allocation4 + $0x108] sm:$0x33] %v871
        %882 = vst [vmem:[#allocation4 + $0x110] sm:$0x33] %v873
        %883 = vst [vmem:[#allocation4 + $0x118] sm:$0x33] %v875
        %884 = vrot.lane.b32.xlu0 %v370, 117
        %v885 = vpop.permute.xlu0 %884
        %886 = vrot.lane.b32.xlu0 %v300, 117
        %v887 = vpop.permute.xlu0 %886
        %888 = vrot.lane.b32.xlu0 %v378, 117
        %v889 = vpop.permute.xlu0 %888
        %890 = vrot.lane.b32.xlu0 %v315, 117
        %v891 = vpop.permute.xlu0 %890
        %892 = vrot.lane.b32.xlu0 %v386, 117
        %v893 = vpop.permute.xlu0 %892
        %v894 = vrot.slane %v885, 4
        %v895 = vrot.slane %v887, 4
        %v896 = vrot.slane %v889, 4
        %v897 = vrot.slane %v891, 4
        %v898 = vrot.slane %v893, 4
        %v899 = vsel %vm345, %v894, %v895
        %vm900 = vcmask 957440
        %v901 = vsel %vm900, %v899, %v887
        %v902 = vsel %vm345, %v895, %v896
        %v903 = vsel %vm900, %v902, %v889
        %v904 = vsel %vm345, %v896, %v897
        %v905 = vsel %vm900, %v904, %v891
        %v906 = vsel %vm345, %v897, %v898
        %v907 = vsel %vm900, %v906, %v893
        %912 = vst [vmem:[#allocation4 + $0x100] sm:$0xcc] %v901
        %913 = vst [vmem:[#allocation4 + $0x108] sm:$0xcc] %v903
        %914 = vst [vmem:[#allocation4 + $0x110] sm:$0xcc] %v905
        %915 = vst [vmem:[#allocation4 + $0x118] sm:$0xcc] %v907
        %916 = vrot.lane.b32.xlu0 %v300, 39
        %v917 = vpop.permute.xlu0 %916
        %918 = vrot.lane.b32.xlu0 %v307, 39
        %v919 = vpop.permute.xlu0 %918
        %920 = vrot.lane.b32.xlu0 %v315, 39
        %v921 = vpop.permute.xlu0 %920
        %922 = vrot.lane.b32.xlu0 %v322, 39
        %v923 = vpop.permute.xlu0 %922
        %924 = vrot.lane.b32.xlu0 %v329, 39
        %v925 = vpop.permute.xlu0 %924
        %v926 = vrot.slane %v917, 4
        %v927 = vrot.slane %v919, 4
        %v928 = vrot.slane %v921, 4
        %v929 = vrot.slane %v923, 4
        %v930 = vrot.slane %v925, 4
        %v931 = vsel %vm345, %v926, %v927
        %vm932 = vcmask 318464
        %v933 = vsel %vm932, %v931, %v919
        %v934 = vsel %vm345, %v927, %v928
        %v935 = vsel %vm932, %v934, %v921
        %v936 = vsel %vm345, %v928, %v929
        %v937 = vsel %vm932, %v936, %v923
        %v938 = vsel %vm345, %v929, %v930
        %v939 = vsel %vm932, %v938, %v925
        %944 = vst [vmem:[#allocation4 + $0x120] sm:$0x33] %v933
        %945 = vst [vmem:[#allocation4 + $0x128] sm:$0x33] %v935
        %946 = vst [vmem:[#allocation4 + $0x130] sm:$0x33] %v937
        %947 = vst [vmem:[#allocation4 + $0x138] sm:$0x33] %v939
        %948 = vrot.lane.b32.xlu0 %v370, 38
        %v949 = vpop.permute.xlu0 %948
        %950 = vrot.lane.b32.xlu0 %v300, 38
        %v951 = vpop.permute.xlu0 %950
        %952 = vrot.lane.b32.xlu0 %v378, 38
        %v953 = vpop.permute.xlu0 %952
        %954 = vrot.lane.b32.xlu0 %v315, 38
        %v955 = vpop.permute.xlu0 %954
        %956 = vrot.lane.b32.xlu0 %v386, 38
        %v957 = vpop.permute.xlu0 %956
        %v958 = vrot.slane %v949, 4
        %v959 = vrot.slane %v951, 4
        %v960 = vrot.slane %v953, 4
        %v961 = vrot.slane %v955, 4
        %v962 = vrot.slane %v957, 4
        %v963 = vsel %vm345, %v958, %v959
        %vm964 = vcmask 310272
        %v965 = vsel %vm964, %v963, %v951
        %v966 = vsel %vm345, %v959, %v960
        %v967 = vsel %vm964, %v966, %v953
        %v968 = vsel %vm345, %v960, %v961
        %v969 = vsel %vm964, %v968, %v955
        %v970 = vsel %vm345, %v961, %v962
        %v971 = vsel %vm964, %v970, %v957
        %976 = vst [vmem:[#allocation4 + $0x120] sm:$0xcc] %v965
        %977 = vst [vmem:[#allocation4 + $0x128] sm:$0xcc] %v967
        %978 = vst [vmem:[#allocation4 + $0x130] sm:$0xcc] %v969
        %979 = vst [vmem:[#allocation4 + $0x138] sm:$0xcc] %v971
        %980 = vrot.lane.b32.xlu0 %v300, 37
        %v981 = vpop.permute.xlu0 %980
        %982 = vrot.lane.b32.xlu0 %v307, 37
        %v983 = vpop.permute.xlu0 %982
        %984 = vrot.lane.b32.xlu0 %v315, 37
        %v985 = vpop.permute.xlu0 %984
        %986 = vrot.lane.b32.xlu0 %v322, 37
        %v987 = vpop.permute.xlu0 %986
        %988 = vrot.lane.b32.xlu0 %v329, 37
        %v989 = vpop.permute.xlu0 %988
        %v990 = vrot.slane %v981, 4
        %v991 = vrot.slane %v983, 4
        %v992 = vrot.slane %v985, 4
        %v993 = vrot.slane %v987, 4
        %v994 = vrot.slane %v989, 4
        %v995 = vsel %vm345, %v990, %v991
        %vm996 = vcmask 302080
        %v997 = vsel %vm996, %v995, %v983
        %v998 = vsel %vm345, %v991, %v992
        %v999 = vsel %vm996, %v998, %v985
        %v1000 = vsel %vm345, %v992, %v993
        %v1001 = vsel %vm996, %v1000, %v987
        %v1002 = vsel %vm345, %v993, %v994
        %v1003 = vsel %vm996, %v1002, %v989
        %1008 = vst [vmem:[#allocation4 + $0x140] sm:$0x33] %v997
        %1009 = vst [vmem:[#allocation4 + $0x148] sm:$0x33] %v999
        %1010 = vst [vmem:[#allocation4 + $0x150] sm:$0x33] %v1001
        %1011 = vst [vmem:[#allocation4 + $0x158] sm:$0x33] %v1003
        %1012 = vrot.lane.b32.xlu0 %v370, 29
        %v1013 = vpop.permute.xlu0 %1012
        %1014 = vrot.lane.b32.xlu0 %v300, 29
        %v1015 = vpop.permute.xlu0 %1014
        %1016 = vrot.lane.b32.xlu0 %v378, 29
        %v1017 = vpop.permute.xlu0 %1016
        %1018 = vrot.lane.b32.xlu0 %v315, 29
        %v1019 = vpop.permute.xlu0 %1018
        %1020 = vrot.lane.b32.xlu0 %v386, 29
        %v1021 = vpop.permute.xlu0 %1020
        %v1022 = vrot.slane %v1013, 4
        %v1023 = vrot.slane %v1015, 4
        %v1024 = vrot.slane %v1017, 4
        %v1025 = vrot.slane %v1019, 4
        %v1026 = vrot.slane %v1021, 4
        %v1027 = vsel %vm345, %v1022, %v1023
        %vm1028 = vcmask 236544
        %v1029 = vsel %vm1028, %v1027, %v1015
        %v1030 = vsel %vm345, %v1023, %v1024
        %v1031 = vsel %vm1028, %v1030, %v1017
        %v1032 = vsel %vm345, %v1024, %v1025
        %v1033 = vsel %vm1028, %v1032, %v1019
        %v1034 = vsel %vm345, %v1025, %v1026
        %v1035 = vsel %vm1028, %v1034, %v1021
        %1040 = vst [vmem:[#allocation4 + $0x140] sm:$0xcc] %v1029
        %1041 = vst [vmem:[#allocation4 + $0x148] sm:$0xcc] %v1031
        %1042 = vst [vmem:[#allocation4 + $0x150] sm:$0xcc] %v1033
        %1043 = vst [vmem:[#allocation4 + $0x158] sm:$0xcc] %v1035
        %1044 = vrot.lane.b32.xlu0 %v300, 28
        %v1045 = vpop.permute.xlu0 %1044
        %1046 = vrot.lane.b32.xlu0 %v307, 28
        %v1047 = vpop.permute.xlu0 %1046
        %1048 = vrot.lane.b32.xlu0 %v315, 28
        %v1049 = vpop.permute.xlu0 %1048
        %1050 = vrot.lane.b32.xlu0 %v322, 28
        %v1051 = vpop.permute.xlu0 %1050
        %1052 = vrot.lane.b32.xlu0 %v329, 28
        %v1053 = vpop.permute.xlu0 %1052
        %v1054 = vrot.slane %v1045, 4
        %v1055 = vrot.slane %v1047, 4
        %v1056 = vrot.slane %v1049, 4
        %v1057 = vrot.slane %v1051, 4
        %v1058 = vrot.slane %v1053, 4
        %v1059 = vsel %vm345, %v1054, %v1055
        %vm1060 = vcmask 228352
        %v1061 = vsel %vm1060, %v1059, %v1047
        %v1062 = vsel %vm345, %v1055, %v1056
        %v1063 = vsel %vm1060, %v1062, %v1049
        %v1064 = vsel %vm345, %v1056, %v1057
        %v1065 = vsel %vm1060, %v1064, %v1051
        %v1066 = vsel %vm345, %v1057, %v1058
        %v1067 = vsel %vm1060, %v1066, %v1053
        %1072 = vst [vmem:[#allocation4 + $0x160] sm:$0x33] %v1061
        %1073 = vst [vmem:[#allocation4 + $0x168] sm:$0x33] %v1063
        %1074 = vst [vmem:[#allocation4 + $0x170] sm:$0x33] %v1065
        %1075 = vst [vmem:[#allocation4 + $0x178] sm:$0x33] %v1067
        %1076 = vrot.lane.b32.xlu0 %v370, 27
        %v1077 = vpop.permute.xlu0 %1076
        %1078 = vrot.lane.b32.xlu0 %v300, 27
        %v1079 = vpop.permute.xlu0 %1078
        %1080 = vrot.lane.b32.xlu0 %v378, 27
        %v1081 = vpop.permute.xlu0 %1080
        %1082 = vrot.lane.b32.xlu0 %v315, 27
        %v1083 = vpop.permute.xlu0 %1082
        %1084 = vrot.lane.b32.xlu0 %v386, 27
        %v1085 = vpop.permute.xlu0 %1084
        %v1086 = vrot.slane %v1077, 4
        %v1087 = vrot.slane %v1079, 4
        %v1088 = vrot.slane %v1081, 4
        %v1089 = vrot.slane %v1083, 4
        %v1090 = vrot.slane %v1085, 4
        %v1091 = vsel %vm345, %v1086, %v1087
        %vm1092 = vcmask 220160
        %v1093 = vsel %vm1092, %v1091, %v1079
        %v1094 = vsel %vm345, %v1087, %v1088
        %v1095 = vsel %vm1092, %v1094, %v1081
        %v1096 = vsel %vm345, %v1088, %v1089
        %v1097 = vsel %vm1092, %v1096, %v1083
        %v1098 = vsel %vm345, %v1089, %v1090
        %v1099 = vsel %vm1092, %v1098, %v1085
        %1104 = vst [vmem:[#allocation4 + $0x160] sm:$0xcc] %v1093
        %1105 = vst [vmem:[#allocation4 + $0x168] sm:$0xcc] %v1095
        %1106 = vst [vmem:[#allocation4 + $0x170] sm:$0xcc] %v1097
        %1107 = vst [vmem:[#allocation4 + $0x178] sm:$0xcc] %v1099
        %1108 = vrot.lane.b32.xlu0 %v300, 19
        %v1109 = vpop.permute.xlu0 %1108
        %1110 = vrot.lane.b32.xlu0 %v307, 19
        %v1111 = vpop.permute.xlu0 %1110
        %1112 = vrot.lane.b32.xlu0 %v315, 19
        %v1113 = vpop.permute.xlu0 %1112
        %1114 = vrot.lane.b32.xlu0 %v322, 19
        %v1115 = vpop.permute.xlu0 %1114
        %1116 = vrot.lane.b32.xlu0 %v329, 19
        %v1117 = vpop.permute.xlu0 %1116
        %v1118 = vrot.slane %v1109, 4
        %v1119 = vrot.slane %v1111, 4
        %v1120 = vrot.slane %v1113, 4
        %v1121 = vrot.slane %v1115, 4
        %v1122 = vrot.slane %v1117, 4
        %v1123 = vsel %vm345, %v1118, %v1119
        %vm1124 = vcmask 154624
        %v1125 = vsel %vm1124, %v1123, %v1111
        %v1126 = vsel %vm345, %v1119, %v1120
        %v1127 = vsel %vm1124, %v1126, %v1113
        %v1128 = vsel %vm345, %v1120, %v1121
        %v1129 = vsel %vm1124, %v1128, %v1115
        %v1130 = vsel %vm345, %v1121, %v1122
        %v1131 = vsel %vm1124, %v1130, %v1117
        %1136 = vst [vmem:[#allocation4 + $0x180] sm:$0x33] %v1125
        %1137 = vst [vmem:[#allocation4 + $0x188] sm:$0x33] %v1127
        %1138 = vst [vmem:[#allocation4 + $0x190] sm:$0x33] %v1129
        %1139 = vst [vmem:[#allocation4 + $0x198] sm:$0x33] %v1131
        %1140 = vrot.lane.b32.xlu0 %v370, 18
        %v1141 = vpop.permute.xlu0 %1140
        %1142 = vrot.lane.b32.xlu0 %v300, 18
        %v1143 = vpop.permute.xlu0 %1142
        %1144 = vrot.lane.b32.xlu0 %v378, 18
        %v1145 = vpop.permute.xlu0 %1144
        %1146 = vrot.lane.b32.xlu0 %v315, 18
        %v1147 = vpop.permute.xlu0 %1146
        %1148 = vrot.lane.b32.xlu0 %v386, 18
        %v1149 = vpop.permute.xlu0 %1148
        %v1150 = vrot.slane %v1141, 4
        %v1151 = vrot.slane %v1143, 4
        %v1152 = vrot.slane %v1145, 4
        %v1153 = vrot.slane %v1147, 4
        %v1154 = vrot.slane %v1149, 4
        %v1155 = vsel %vm345, %v1150, %v1151
        %vm1156 = vcmask 146432
        %v1157 = vsel %vm1156, %v1155, %v1143
        %v1158 = vsel %vm345, %v1151, %v1152
        %v1159 = vsel %vm1156, %v1158, %v1145
        %v1160 = vsel %vm345, %v1152, %v1153
        %v1161 = vsel %vm1156, %v1160, %v1147
        %v1162 = vsel %vm345, %v1153, %v1154
        %v1163 = vsel %vm1156, %v1162, %v1149
        %1168 = vst [vmem:[#allocation4 + $0x180] sm:$0xcc] %v1157
        %1169 = vst [vmem:[#allocation4 + $0x188] sm:$0xcc] %v1159
        %1170 = vst [vmem:[#allocation4 + $0x190] sm:$0xcc] %v1161
        %1171 = vst [vmem:[#allocation4 + $0x198] sm:$0xcc] %v1163
        %1172 = vrot.lane.b32.xlu0 %v300, 17
        %v1173 = vpop.permute.xlu0 %1172
        %1174 = vrot.lane.b32.xlu0 %v307, 17
        %v1175 = vpop.permute.xlu0 %1174
        %1176 = vrot.lane.b32.xlu0 %v315, 17
        %v1177 = vpop.permute.xlu0 %1176
        %1178 = vrot.lane.b32.xlu0 %v322, 17
        %v1179 = vpop.permute.xlu0 %1178
        %1180 = vrot.lane.b32.xlu0 %v329, 17
        %v1181 = vpop.permute.xlu0 %1180
        %v1182 = vrot.slane %v1173, 4
        %v1183 = vrot.slane %v1175, 4
        %v1184 = vrot.slane %v1177, 4
        %v1185 = vrot.slane %v1179, 4
        %v1186 = vrot.slane %v1181, 4
        %v1187 = vsel %vm345, %v1182, %v1183
        %vm1188 = vcmask 138240
        %v1189 = vsel %vm1188, %v1187, %v1175
        %v1190 = vsel %vm345, %v1183, %v1184
        %v1191 = vsel %vm1188, %v1190, %v1177
        %v1192 = vsel %vm345, %v1184, %v1185
        %v1193 = vsel %vm1188, %v1192, %v1179
        %v1194 = vsel %vm345, %v1185, %v1186
        %v1195 = vsel %vm1188, %v1194, %v1181
        %1200 = vst [vmem:[#allocation4 + $0x1a0] sm:$0x33] %v1189
        %1201 = vst [vmem:[#allocation4 + $0x1a8] sm:$0x33] %v1191
        %1202 = vst [vmem:[#allocation4 + $0x1b0] sm:$0x33] %v1193
        %1203 = vst [vmem:[#allocation4 + $0x1b8] sm:$0x33] %v1195
        %v1204 = vld [vmem:[#allocation7] sm:$0xf]
        %v1205 = vld [vmem:[#allocation4] sm:$0xff]
        %v1206 = vld [vmem:[#allocation4 + $0x8] sm:$0xff]
        %v1207 = vld [vmem:[#allocation4 + $0x10] sm:$0xff]
        %v1208 = vld [vmem:[#allocation4 + $0x18] sm:$0xff]
        %v1209 = vld [vmem:[#allocation4 + $0x20] sm:$0xff]
        %v1210 = vld [vmem:[#allocation4 + $0x28] sm:$0xff]
        %v1211 = vld [vmem:[#allocation4 + $0x30] sm:$0xff]
        %v1212 = vld [vmem:[#allocation4 + $0x38] sm:$0xff]
        %v1213 = vld [vmem:[#allocation4 + $0x40] sm:$0xff]
        %v1214 = vld [vmem:[#allocation4 + $0x48] sm:$0xff]
        %v1215 = vld [vmem:[#allocation4 + $0x50] sm:$0xff]
        %v1216 = vld [vmem:[#allocation4 + $0x58] sm:$0xff]
        %v1217 = vld [vmem:[#allocation4 + $0x60] sm:$0xff]
        %v1218 = vld [vmem:[#allocation4 + $0x68] sm:$0xff]
        %v1219 = vld [vmem:[#allocation4 + $0x70] sm:$0xff]
        %v1220 = vld [vmem:[#allocation4 + $0x78] sm:$0xff]
        %v1221 = vld [vmem:[#allocation4 + $0x80] sm:$0xff]
        %v1222 = vld [vmem:[#allocation4 + $0x88] sm:$0xff]
        %v1223 = vld [vmem:[#allocation4 + $0x90] sm:$0xff]
        %v1224 = vld [vmem:[#allocation4 + $0x98] sm:$0xff]
        %v1225 = vld [vmem:[#allocation4 + $0xa0] sm:$0xff]
        %v1226 = vld [vmem:[#allocation4 + $0xa8] sm:$0xff]
        %v1227 = vld [vmem:[#allocation4 + $0xb0] sm:$0xff]
        %v1228 = vld [vmem:[#allocation4 + $0xb8] sm:$0xff]
        %v1229 = vld [vmem:[#allocation4 + $0xc0] sm:$0xff]
        %v1230 = vld [vmem:[#allocation4 + $0xc8] sm:$0xff]
        %v1231 = vld [vmem:[#allocation4 + $0xd0] sm:$0xff]
        %v1232 = vld [vmem:[#allocation4 + $0xd8] sm:$0xff]
        %v1233 = vld [vmem:[#allocation4 + $0xe0] sm:$0xff]
        %v1234 = vld [vmem:[#allocation4 + $0xe8] sm:$0xff]
        %v1235 = vld [vmem:[#allocation4 + $0xf0] sm:$0xff]
        %v1236 = vld [vmem:[#allocation4 + $0xf8] sm:$0xff]
        %v1237 = vld [vmem:[#allocation4 + $0x100] sm:$0xff]
        %v1238 = vld [vmem:[#allocation4 + $0x108] sm:$0xff]
        %v1239 = vld [vmem:[#allocation4 + $0x110] sm:$0xff]
        %v1240 = vld [vmem:[#allocation4 + $0x118] sm:$0xff]
        %v1241 = vld [vmem:[#allocation4 + $0x120] sm:$0xff]
        %v1242 = vld [vmem:[#allocation4 + $0x128] sm:$0xff]
        %v1243 = vld [vmem:[#allocation4 + $0x130] sm:$0xff]
        %v1244 = vld [vmem:[#allocation4 + $0x138] sm:$0xff]
        %v1245 = vld [vmem:[#allocation4 + $0x140] sm:$0xff]
        %v1246 = vld [vmem:[#allocation4 + $0x148] sm:$0xff]
        %v1247 = vld [vmem:[#allocation4 + $0x150] sm:$0xff]
        %v1248 = vld [vmem:[#allocation4 + $0x158] sm:$0xff]
        %v1249 = vld [vmem:[#allocation4 + $0x160] sm:$0xff]
        %v1250 = vld [vmem:[#allocation4 + $0x168] sm:$0xff]
        %v1251 = vld [vmem:[#allocation4 + $0x170] sm:$0xff]
        %v1252 = vld [vmem:[#allocation4 + $0x178] sm:$0xff]
        %v1253 = vld [vmem:[#allocation4 + $0x180] sm:$0xff]
        %v1254 = vld [vmem:[#allocation4 + $0x188] sm:$0xff]
        %v1255 = vld [vmem:[#allocation4 + $0x190] sm:$0xff]
        %v1256 = vld [vmem:[#allocation4 + $0x198] sm:$0xff]
        %v1257 = vld [vmem:[#allocation4 + $0x1a0] sm:$0x33]
        %v1258 = vld [vmem:[#allocation4 + $0x1a8] sm:$0x33]
        %v1259 = vld [vmem:[#allocation4 + $0x1b0] sm:$0x33]
        %v1260 = vld [vmem:[#allocation4 + $0x1b8] sm:$0x33]
        %v1317 = vunpack.c.l.b16 %v1205
        %v1318 = vunpack.c.h.b16 %v1205
        %v1319 = vunpack.c.l.b16 %v1206
        %v1320 = vunpack.c.h.b16 %v1206
        %v1321 = vunpack.c.l.b16 %v1207
        %v1322 = vunpack.c.h.b16 %v1207
        %v1323 = vunpack.c.l.b16 %v1208
        %v1324 = vunpack.c.h.b16 %v1208
        %v1325 = vunpack.c.l.b16 %v1209
        %v1326 = vunpack.c.h.b16 %v1209
        %v1327 = vunpack.c.l.b16 %v1210
        %v1328 = vunpack.c.h.b16 %v1210
        %v1329 = vunpack.c.l.b16 %v1211
        %v1330 = vunpack.c.h.b16 %v1211
        %v1331 = vunpack.c.l.b16 %v1212
        %v1332 = vunpack.c.h.b16 %v1212
        %v1333 = vunpack.c.l.b16 %v1213
        %v1334 = vunpack.c.h.b16 %v1213
        %v1335 = vunpack.c.l.b16 %v1214
        %v1336 = vunpack.c.h.b16 %v1214
        %v1337 = vunpack.c.l.b16 %v1215
        %v1338 = vunpack.c.h.b16 %v1215
        %v1339 = vunpack.c.l.b16 %v1216
        %v1340 = vunpack.c.h.b16 %v1216
        %v1341 = vunpack.c.l.b16 %v1217
        %v1342 = vunpack.c.h.b16 %v1217
        %v1343 = vunpack.c.l.b16 %v1218
        %v1344 = vunpack.c.h.b16 %v1218
        %v1345 = vunpack.c.l.b16 %v1219
        %v1346 = vunpack.c.h.b16 %v1219
        %v1347 = vunpack.c.l.b16 %v1220
        %v1348 = vunpack.c.h.b16 %v1220
        %v1349 = vunpack.c.l.b16 %v1221
        %v1350 = vunpack.c.h.b16 %v1221
        %v1351 = vunpack.c.l.b16 %v1222
        %v1352 = vunpack.c.h.b16 %v1222
        %v1353 = vunpack.c.l.b16 %v1223
        %v1354 = vunpack.c.h.b16 %v1223
        %v1355 = vunpack.c.l.b16 %v1224
        %v1356 = vunpack.c.h.b16 %v1224
        %v1357 = vunpack.c.l.b16 %v1225
        %v1358 = vunpack.c.h.b16 %v1225
        %v1359 = vunpack.c.l.b16 %v1226
        %v1360 = vunpack.c.h.b16 %v1226
        %v1361 = vunpack.c.l.b16 %v1227
        %v1362 = vunpack.c.h.b16 %v1227
        %v1363 = vunpack.c.l.b16 %v1228
        %v1364 = vunpack.c.h.b16 %v1228
        %v1365 = vunpack.c.l.b16 %v1229
        %v1366 = vunpack.c.h.b16 %v1229
        %v1367 = vunpack.c.l.b16 %v1230
        %v1368 = vunpack.c.h.b16 %v1230
        %v1369 = vunpack.c.l.b16 %v1231
        %v1370 = vunpack.c.h.b16 %v1231
        %v1371 = vunpack.c.l.b16 %v1232
        %v1372 = vunpack.c.h.b16 %v1232
        %v1373 = vunpack.c.l.b16 %v1233
        %v1374 = vunpack.c.h.b16 %v1233
        %v1375 = vunpack.c.l.b16 %v1234
        %v1376 = vunpack.c.h.b16 %v1234
        %v1377 = vunpack.c.l.b16 %v1235
        %v1378 = vunpack.c.h.b16 %v1235
        %v1379 = vunpack.c.l.b16 %v1236
        %v1380 = vunpack.c.h.b16 %v1236
        %v1381 = vunpack.c.l.b16 %v1237
        %v1382 = vunpack.c.h.b16 %v1237
        %v1383 = vunpack.c.l.b16 %v1238
        %v1384 = vunpack.c.h.b16 %v1238
        %v1385 = vunpack.c.l.b16 %v1239
        %v1386 = vunpack.c.h.b16 %v1239
        %v1387 = vunpack.c.l.b16 %v1240
        %v1388 = vunpack.c.h.b16 %v1240
        %v1389 = vunpack.c.l.b16 %v1241
        %v1390 = vunpack.c.h.b16 %v1241
        %v1391 = vunpack.c.l.b16 %v1242
        %v1392 = vunpack.c.h.b16 %v1242
        %v1393 = vunpack.c.l.b16 %v1243
        %v1394 = vunpack.c.h.b16 %v1243
        %v1395 = vunpack.c.l.b16 %v1244
        %v1396 = vunpack.c.h.b16 %v1244
        %v1397 = vunpack.c.l.b16 %v1245
        %v1398 = vunpack.c.h.b16 %v1245
        %v1399 = vunpack.c.l.b16 %v1246
        %v1400 = vunpack.c.h.b16 %v1246
        %v1401 = vunpack.c.l.b16 %v1247
        %v1402 = vunpack.c.h.b16 %v1247
        %v1403 = vunpack.c.l.b16 %v1248
        %v1404 = vunpack.c.h.b16 %v1248
        %v1405 = vunpack.c.l.b16 %v1249
        %v1406 = vunpack.c.h.b16 %v1249
        %v1407 = vunpack.c.l.b16 %v1250
        %v1408 = vunpack.c.h.b16 %v1250
        %v1409 = vunpack.c.l.b16 %v1251
        %v1410 = vunpack.c.h.b16 %v1251
        %v1411 = vunpack.c.l.b16 %v1252
        %v1412 = vunpack.c.h.b16 %v1252
        %v1413 = vunpack.c.l.b16 %v1253
        %v1414 = vunpack.c.h.b16 %v1253
        %v1415 = vunpack.c.l.b16 %v1254
        %v1416 = vunpack.c.h.b16 %v1254
        %v1417 = vunpack.c.l.b16 %v1255
        %v1418 = vunpack.c.h.b16 %v1255
        %v1419 = vunpack.c.l.b16 %v1256
        %v1420 = vunpack.c.h.b16 %v1256
        %v1421 = vunpack.c.l.b16 %v1257
        %v1422 = vunpack.c.h.b16 %v1257
        %v1423 = vunpack.c.l.b16 %v1258
        %v1424 = vunpack.c.h.b16 %v1258
        %v1425 = vunpack.c.l.b16 %v1259
        %v1426 = vunpack.c.h.b16 %v1259
        %v1427 = vunpack.c.l.b16 %v1260
        %v1428 = vunpack.c.h.b16 %v1260
        %v1429 = vpack.c.b16 %v1325, %v1317
        %v1430 = vpack.c.b16 %v1326, %v1318
        %v1431 = vpack.c.b16 %v1327, %v1319
        %v1432 = vpack.c.b16 %v1328, %v1320
        %v1433 = vpack.c.b16 %v1329, %v1321
        %v1434 = vpack.c.b16 %v1330, %v1322
        %v1435 = vpack.c.b16 %v1331, %v1323
        %v1436 = vpack.c.b16 %v1332, %v1324
        %v1437 = vpack.c.b16 %v1341, %v1333
        %v1438 = vpack.c.b16 %v1342, %v1334
        %v1439 = vpack.c.b16 %v1343, %v1335
        %v1440 = vpack.c.b16 %v1344, %v1336
        %v1441 = vpack.c.b16 %v1345, %v1337
        %v1442 = vpack.c.b16 %v1346, %v1338
        %v1443 = vpack.c.b16 %v1347, %v1339
        %v1444 = vpack.c.b16 %v1348, %v1340
        %v1445 = vpack.c.b16 %v1357, %v1349
        %v1446 = vpack.c.b16 %v1358, %v1350
        %v1447 = vpack.c.b16 %v1359, %v1351
        %v1448 = vpack.c.b16 %v1360, %v1352
        %v1449 = vpack.c.b16 %v1361, %v1353
        %v1450 = vpack.c.b16 %v1362, %v1354
        %v1451 = vpack.c.b16 %v1363, %v1355
        %v1452 = vpack.c.b16 %v1364, %v1356
        %v1453 = vpack.c.b16 %v1373, %v1365
        %v1454 = vpack.c.b16 %v1374, %v1366
        %v1455 = vpack.c.b16 %v1375, %v1367
        %v1456 = vpack.c.b16 %v1376, %v1368
        %v1457 = vpack.c.b16 %v1377, %v1369
        %v1458 = vpack.c.b16 %v1378, %v1370
        %v1459 = vpack.c.b16 %v1379, %v1371
        %v1460 = vpack.c.b16 %v1380, %v1372
        %v1461 = vpack.c.b16 %v1389, %v1381
        %v1462 = vpack.c.b16 %v1390, %v1382
        %v1463 = vpack.c.b16 %v1391, %v1383
        %v1464 = vpack.c.b16 %v1392, %v1384
        %v1465 = vpack.c.b16 %v1393, %v1385
        %v1466 = vpack.c.b16 %v1394, %v1386
        %v1467 = vpack.c.b16 %v1395, %v1387
        %v1468 = vpack.c.b16 %v1396, %v1388
        %v1469 = vpack.c.b16 %v1405, %v1397
        %v1470 = vpack.c.b16 %v1406, %v1398
        %v1471 = vpack.c.b16 %v1407, %v1399
        %v1472 = vpack.c.b16 %v1408, %v1400
        %v1473 = vpack.c.b16 %v1409, %v1401
        %v1474 = vpack.c.b16 %v1410, %v1402
        %v1475 = vpack.c.b16 %v1411, %v1403
        %v1476 = vpack.c.b16 %v1412, %v1404
        %v1477 = vpack.c.b16 %v1421, %v1413
        %v1478 = vpack.c.b16 %v1422, %v1414
        %v1479 = vpack.c.b16 %v1423, %v1415
        %v1480 = vpack.c.b16 %v1424, %v1416
        %v1481 = vpack.c.b16 %v1425, %v1417
        %v1482 = vpack.c.b16 %v1426, %v1418
        %v1483 = vpack.c.b16 %v1427, %v1419
        %v1484 = vpack.c.b16 %v1428, %v1420
        %vm1533 = vcmask 883712
        %v1535 = vsel %vm1533, %v1204, 0
        %vm1537 = vcmask 1045504
        %v1539 = vsel %vm1537, %v1477, 0
        %v1542 = vsel %vm1537, %v1478, 0
        %v1545 = vsel %vm1537, %v1479, 0
        %v1548 = vsel %vm1537, %v1480, 0
        %v1551 = vsel %vm1537, %v1481, 0
        %v1554 = vsel %vm1537, %v1482, 0
        %v1557 = vsel %vm1537, %v1483, 0
        %v1560 = vsel %vm1537, %v1484, 0
        %1562 = vmatprep.subr.bf16.mxu0 %v1430
        %1563 = vmatpush1.bf16.msra.mxu0 %v1429
        %1564 = vmatprep.subr.bf16.mxu0 %v1438
        %1565 = vmatpush1.bf16.msra.mxu0 %v1437
        %1566 = vmatprep.subr.bf16.mxu0 %v1446
        %1567 = vmatpush1.bf16.msra.mxu0 %v1445
        %1568 = vmatprep.subr.bf16.mxu0 %v1454
        %1569 = vmatpush1.bf16.msra.mxu0 %v1453
        %1570 = vmatprep.subr.bf16.mxu0 %v1462
        %1571 = vmatpush1.bf16.msra.mxu0 %v1461
        %1572 = vmatprep.subr.bf16.mxu0 %v1470
        %1573 = vmatpush1.bf16.msra.mxu0 %v1469
        %1574 = vmatprep.subr.bf16.mxu0 %v1542
        %1575 = vmatpush1.bf16.msra.mxu0 %v1539
        %1576 = vmatprep.subr.bf16.mxu0 0
        %1577 = vmatpush1.bf16.msra.mxu0 0
        %1578 = vmatprep.subr.bf16.mxu0 0
        %1579 = vmatpush1.bf16.msra.mxu0 0
        %1580 = vmatprep.subr.bf16.mxu0 0
        %1581 = vmatpush1.bf16.msra.mxu0 0
        %1582 = vmatprep.subr.bf16.mxu0 0
        %1583 = vmatpush1.bf16.msra.mxu0 0
        %1584 = vmatprep.subr.bf16.mxu0 0
        %1585 = vmatpush1.bf16.msra.mxu0 0
        %1586 = vmatprep.subr.bf16.mxu0 0
        %1587 = vmatpush1.bf16.msra.mxu0 0
        %1588 = vmatprep.subr.bf16.mxu0 0
        %1589 = vmatpush1.bf16.msra.mxu0 0
        %1590 = vmatprep.subr.bf16.mxu0 0
        %1591 = vmatpush1.bf16.msra.mxu0 0
        %1592 = vmatprep.subr.bf16.mxu0 0
        %1593 = vmatpush1.bf16.msra.mxu0 0
        %1594 = vmatprep.mubr.bf16.mxu0 0
        %1595 = vmatmul.mubr.bf16.gmra.mrb[0].mxu0 %v1535
        %v1596 = vpop.f32.mrb[0].mxu0
        %v1597 = vadd.f32 0.0, %v1596
        %v1598 = vpop.f32.mrb[0].mxu0
        %v1599 = vadd.f32 0.0, %v1598
        %v1600 = vpop.f32.mrb[0].mxu0
        %v1601 = vpop.f32.mrb[0].mxu0
        %1602 = vdwg.mxu0
        %1603 = vmatprep.subr.bf16.mxu0 %v1432
        %1604 = vmatpush1.bf16.msra.mxu0 %v1431
        %1605 = vmatprep.subr.bf16.mxu0 %v1440
        %1606 = vmatpush1.bf16.msra.mxu0 %v1439
        %1607 = vmatprep.subr.bf16.mxu0 %v1448
        %1608 = vmatpush1.bf16.msra.mxu0 %v1447
        %1609 = vmatprep.subr.bf16.mxu0 %v1456
        %1610 = vmatpush1.bf16.msra.mxu0 %v1455
        %1611 = vmatprep.subr.bf16.mxu0 %v1464
        %1612 = vmatpush1.bf16.msra.mxu0 %v1463
        %1613 = vmatprep.subr.bf16.mxu0 %v1472
        %1614 = vmatpush1.bf16.msra.mxu0 %v1471
        %1615 = vmatprep.subr.bf16.mxu0 %v1548
        %1616 = vmatpush1.bf16.msra.mxu0 %v1545
        %1617 = vmatprep.subr.bf16.mxu0 0
        %1618 = vmatpush1.bf16.msra.mxu0 0
        %1619 = vmatprep.subr.bf16.mxu0 0
        %1620 = vmatpush1.bf16.msra.mxu0 0
        %1621 = vmatprep.subr.bf16.mxu0 0
        %1622 = vmatpush1.bf16.msra.mxu0 0
        %1623 = vmatprep.subr.bf16.mxu0 0
        %1624 = vmatpush1.bf16.msra.mxu0 0
        %1625 = vmatprep.subr.bf16.mxu0 0
        %1626 = vmatpush1.bf16.msra.mxu0 0
        %1627 = vmatprep.subr.bf16.mxu0 0
        %1628 = vmatpush1.bf16.msra.mxu0 0
        %1629 = vmatprep.subr.bf16.mxu0 0
        %1630 = vmatpush1.bf16.msra.mxu0 0
        %1631 = vmatprep.subr.bf16.mxu0 0
        %1632 = vmatpush1.bf16.msra.mxu0 0
        %1633 = vmatprep.subr.bf16.mxu0 0
        %1634 = vmatpush1.bf16.msra.mxu0 0
        %1635 = vmatprep.mubr.bf16.mxu0 0
        %1636 = vmatmul.mubr.bf16.gmra.mrb[0].mxu0 %v1535
        %v1637 = vpop.f32.mrb[0].mxu0
        %v1638 = vadd.f32 0.0, %v1637
        %v1639 = vpop.f32.mrb[0].mxu0
        %v1640 = vadd.f32 0.0, %v1639
        %v1641 = vpop.f32.mrb[0].mxu0
        %v1642 = vpop.f32.mrb[0].mxu0
        %1643 = vdwg.mxu0
        %1644 = vmatprep.subr.bf16.mxu0 %v1434
        %1645 = vmatpush1.bf16.msra.mxu0 %v1433
        %1646 = vmatprep.subr.bf16.mxu0 %v1442
        %1647 = vmatpush1.bf16.msra.mxu0 %v1441
        %1648 = vmatprep.subr.bf16.mxu0 %v1450
        %1649 = vmatpush1.bf16.msra.mxu0 %v1449
        %1650 = vmatprep.subr.bf16.mxu0 %v1458
        %1651 = vmatpush1.bf16.msra.mxu0 %v1457
        %1652 = vmatprep.subr.bf16.mxu0 %v1466
        %1653 = vmatpush1.bf16.msra.mxu0 %v1465
        %1654 = vmatprep.subr.bf16.mxu0 %v1474
        %1655 = vmatpush1.bf16.msra.mxu0 %v1473
        %1656 = vmatprep.subr.bf16.mxu0 %v1554
        %1657 = vmatpush1.bf16.msra.mxu0 %v1551
        %1658 = vmatprep.subr.bf16.mxu0 0
        %1659 = vmatpush1.bf16.msra.mxu0 0
        %1660 = vmatprep.subr.bf16.mxu0 0
        %1661 = vmatpush1.bf16.msra.mxu0 0
        %1662 = vmatprep.subr.bf16.mxu0 0
        %1663 = vmatpush1.bf16.msra.mxu0 0
        %1664 = vmatprep.subr.bf16.mxu0 0
        %1665 = vmatpush1.bf16.msra.mxu0 0
        %1666 = vmatprep.subr.bf16.mxu0 0
        %1667 = vmatpush1.bf16.msra.mxu0 0
        %1668 = vmatprep.subr.bf16.mxu0 0
        %1669 = vmatpush1.bf16.msra.mxu0 0
        %1670 = vmatprep.subr.bf16.mxu0 0
        %1671 = vmatpush1.bf16.msra.mxu0 0
        %1672 = vmatprep.subr.bf16.mxu0 0
        %1673 = vmatpush1.bf16.msra.mxu0 0
        %1674 = vmatprep.subr.bf16.mxu0 0
        %1675 = vmatpush1.bf16.msra.mxu0 0
        %1676 = vmatprep.mubr.bf16.mxu0 0
        %1677 = vmatmul.mubr.bf16.gmra.mrb[0].mxu0 %v1535
        %v1678 = vpop.f32.mrb[0].mxu0
        %v1679 = vadd.f32 0.0, %v1678
        %v1680 = vpop.f32.mrb[0].mxu0
        %v1681 = vadd.f32 0.0, %v1680
        %v1682 = vpop.f32.mrb[0].mxu0
        %v1683 = vpop.f32.mrb[0].mxu0
        %1684 = vdwg.mxu0
        %1685 = vmatprep.subr.bf16.mxu0 %v1436
        %1686 = vmatpush1.bf16.msra.mxu0 %v1435
        %1687 = vmatprep.subr.bf16.mxu0 %v1444
        %1688 = vmatpush1.bf16.msra.mxu0 %v1443
        %1689 = vmatprep.subr.bf16.mxu0 %v1452
        %1690 = vmatpush1.bf16.msra.mxu0 %v1451
        %1691 = vmatprep.subr.bf16.mxu0 %v1460
        %1692 = vmatpush1.bf16.msra.mxu0 %v1459
        %1693 = vmatprep.subr.bf16.mxu0 %v1468
        %1694 = vmatpush1.bf16.msra.mxu0 %v1467
        %1695 = vmatprep.subr.bf16.mxu0 %v1476
        %1696 = vmatpush1.bf16.msra.mxu0 %v1475
        %1697 = vmatprep.subr.bf16.mxu0 %v1560
        %1698 = vmatpush1.bf16.msra.mxu0 %v1557
        %1699 = vmatprep.subr.bf16.mxu0 0
        %1700 = vmatpush1.bf16.msra.mxu0 0
        %1701 = vmatprep.subr.bf16.mxu0 0
        %1702 = vmatpush1.bf16.msra.mxu0 0
        %1703 = vmatprep.subr.bf16.mxu0 0
        %1704 = vmatpush1.bf16.msra.mxu0 0
        %1705 = vmatprep.subr.bf16.mxu0 0
        %1706 = vmatpush1.bf16.msra.mxu0 0
        %1707 = vmatprep.subr.bf16.mxu0 0
        %1708 = vmatpush1.bf16.msra.mxu0 0
        %1709 = vmatprep.subr.bf16.mxu0 0
        %1710 = vmatpush1.bf16.msra.mxu0 0
        %1711 = vmatprep.subr.bf16.mxu0 0
        %1712 = vmatpush1.bf16.msra.mxu0 0
        %1713 = vmatprep.subr.bf16.mxu0 0
        %1714 = vmatpush1.bf16.msra.mxu0 0
        %1715 = vmatprep.subr.bf16.mxu0 0
        %1716 = vmatpush1.bf16.msra.mxu0 0
        %1717 = vmatprep.mubr.bf16.mxu0 0
        %1718 = vmatmul.mubr.bf16.gmra.mrb[0].mxu0 %v1535
        %v1719 = vpop.f32.mrb[0].mxu0
        %v1720 = vadd.f32 0.0, %v1719
        %v1721 = vpop.f32.mrb[0].mxu0
        %v1722 = vadd.f32 0.0, %v1721
        %v1723 = vpop.f32.mrb[0].mxu0
        %v1724 = vpop.f32.mrb[0].mxu0
        %1725 = vdwg.mxu0
        %v1726 = vld [vmem:[#allocation10] sm:$0xff]
        %v1728 = vlaneseq
        %v1729 = vshrl.u32 %v1728, 7
        %v1730 = vsub.s32 0, %v1729
        %v1731 = vrot.slane %v1726, %v1730
        %v1732 = vlaneseq
        %v1733 = vshrl.u32 %v1732, 7
        %v1734 = vsub.s32 1, %v1733
        %v1735 = vrot.slane %v1726, %v1734
        %v1736 = vlaneseq
        %v1737 = vshrl.u32 %v1736, 7
        %v1738 = vsub.s32 2, %v1737
        %v1739 = vrot.slane %v1726, %v1738
        %v1740 = vlaneseq
        %v1741 = vshrl.u32 %v1740, 7
        %v1742 = vsub.s32 3, %v1741
        %v1743 = vrot.slane %v1726, %v1742
        %v1744 = vlaneseq
        %v1745 = vshrl.u32 %v1744, 7
        %v1746 = vsub.s32 4, %v1745
        %v1747 = vrot.slane %v1726, %v1746
        %v1748 = vlaneseq
        %v1749 = vshrl.u32 %v1748, 7
        %v1750 = vsub.s32 5, %v1749
        %v1751 = vrot.slane %v1726, %v1750
        %v1752 = vlaneseq
        %v1753 = vshrl.u32 %v1752, 7
        %v1754 = vsub.s32 6, %v1753
        %v1755 = vrot.slane %v1726, %v1754
        %v1756 = vlaneseq
        %v1757 = vshrl.u32 %v1756, 7
        %v1758 = vsub.s32 7, %v1757
        %v1759 = vrot.slane %v1726, %v1758
        %v1768 = vmul.f32 %v1597, %v1731
        %v1769 = vmul.f32 %v1599, %v1735
        %v1770 = vmul.f32 %v1638, %v1739
        %v1771 = vmul.f32 %v1640, %v1743
        %v1772 = vmul.f32 %v1679, %v1747
        %v1773 = vmul.f32 %v1681, %v1751
        %v1774 = vmul.f32 %v1720, %v1755
        %v1775 = vmul.f32 %v1722, %v1759
        %v1776 = vld [vmem:[#allocation5] sm:$0xff]
        %v1777 = vadd.f32 %v1768, %v1769
        %v1778 = vadd.f32 %v1777, %v1770
        %v1779 = vadd.f32 %v1778, %v1771
        %v1780 = vadd.f32 %v1779, %v1772
        %v1781 = vadd.f32 %v1780, %v1773
        %v1782 = vadd.f32 %v1781, %v1774
        %v1783 = vadd.f32 %v1782, %v1775
        %1784 = vadd.xlane.f32.xlu0 %v1783
        %v1785 = vpop.xlane.xlu0 %1784
        %v1786 = vadd.f32 %v1776, %v1785
        %vm1787 = vcmask 7168
        %1788 = vst.msk [vmem:[#allocation5] sm:$0xff] %vm1787, %v1786
        %v1789 = vld [vmem:[#allocation6] sm:$0xff]
        %v1790 = vmul.f32 %v1768, %v1597
        %v1791 = vmul.f32 %v1769, %v1599
        %v1792 = vmul.f32 %v1770, %v1638
        %v1793 = vmul.f32 %v1771, %v1640
        %v1794 = vmul.f32 %v1772, %v1679
        %v1795 = vmul.f32 %v1773, %v1681
        %v1796 = vmul.f32 %v1774, %v1720
        %v1797 = vmul.f32 %v1775, %v1722
        %v1798 = vadd.f32 %v1790, %v1791
        %v1799 = vadd.f32 %v1798, %v1792
        %v1800 = vadd.f32 %v1799, %v1793
        %v1801 = vadd.f32 %v1800, %v1794
        %v1802 = vadd.f32 %v1801, %v1795
        %v1803 = vadd.f32 %v1802, %v1796
        %v1804 = vadd.f32 %v1803, %v1797
        %1805 = vadd.xlane.f32.xlu0 %v1804
        %v1806 = vpop.xlane.xlu0 %1805
        %v1807 = vadd.f32 %v1789, %v1806
        %1808 = vst.msk [vmem:[#allocation6] sm:$0xff] %vm1787, %v1807
        %v1809 = vpack.c.bf16 %v1597, %v1597
        %v1810 = vpack.c.bf16 %v1599, %v1599
        %v1811 = vpack.c.bf16 %v1638, %v1638
        %v1812 = vpack.c.bf16 %v1640, %v1640
        %v1813 = vpack.c.bf16 %v1679, %v1679
        %v1814 = vpack.c.bf16 %v1681, %v1681
        %v1815 = vpack.c.bf16 %v1720, %v1720
        %v1816 = vpack.c.bf16 %v1722, %v1722
        %v1825 = vunpack.c.l.b16 %v1809
        %v1826 = vunpack.c.l.b16 %v1810
        %v1827 = vunpack.c.l.b16 %v1811
        %v1828 = vunpack.c.l.b16 %v1812
        %v1829 = vunpack.c.l.b16 %v1813
        %v1830 = vunpack.c.l.b16 %v1814
        %v1831 = vunpack.c.l.b16 %v1815
        %v1832 = vunpack.c.l.b16 %v1816
        %v1833 = vpack.c.b16 %v1826, %v1825
        %v1834 = vpack.c.b16 %v1828, %v1827
        %v1835 = vpack.c.b16 %v1830, %v1829
        %v1836 = vpack.c.b16 %v1832, %v1831
        %1841 = vst [vmem:[%s200] sm:$0xff] %v1833
        %1842 = vst [vmem:[%s200 + $0x8] sm:$0xff] %v1834
        %1843 = vst [vmem:[%s200 + $0x10] sm:$0xff] %v1835
        %1844 = vst [vmem:[%s200 + $0x18] sm:$0xff] %v1836
        // Predicated region
        $region53: #{tpu_custom_call.1} parent=27 // pred_check
          %p1845 = pneg %p227
        $region54: #{tpu_custom_call.1} parent=27 // pred_check_branch
          %1847 = sbr.rel (%p1845) target = $region56
        $region55: #{tpu_custom_call.1} parent=27 // pred_region
          %v1848 = vld [vmem:[#allocation5] sm:$0xff]
          %v1849 = vmul.f32 %v1848, 0.001953125
          %v1850 = vld [vmem:[#allocation6] sm:$0xff]
          %v1851 = vmul.f32 %v1850, 0.001953125
          %v1852 = vmul.f32 %v1849, %v1849
          %v1853 = vsub.f32 %v1851, %v1852
          %v1854 = vmax.f32 %v1853, 0.0
          %1855 = vst.msk [vmem:[%s213] sm:$0xff] %vm1787, %v1849
          %v1856 = vadd.f32 %v1854, 1e-05
          %v1857 = vrsqrt.pop %v1856
          %1859 = vrot.lane.b32.xlu0 %v1857, 1
          %v1860 = vpop.permute.xlu0 %1859
          %vm1862 = vcmask 15368
          %1863 = vst.msk [vmem:[%s213] sm:$0xff] %vm1862, %v1860
        $region56: #{tpu_custom_call.1} parent=27 // pred_fallthru
          _
        %s1864 = sand.u32 %s92, 1
        %s1865 = scalar_lea.sflag [#allocation9], %s1864
        %s1866 = sand.u32 %s92, 1
        %s1867 = smul.addr %s1866, 32
        %s1868 = scalar_lea.vmem [#allocation12], %s1867
        %p1869 = scmp.lt.s32.totalorder %s25, 1
        %s1870 = scalar_select %p1869, %s25, 1
        %s1871 = smul.addr %s1870, 8
        %s1872 = scalar_lea.vmem %s4, %s1871
        // Predicated region
        $region57: #{tpu_custom_call.1} parent=27 // pred_check
          %p1873 = pneg %p102
        $region58: #{tpu_custom_call.1} parent=27 // pred_check_branch
          %1875 = sbr.rel (%p1873) target = $region60
        $region59: #{tpu_custom_call.1} parent=27 // pred_region
          %s1876 = sadd.s32 %s26, 1
          %s1877 = smul.u32 8, %s1876
          %s1879 = ssub.s32 512, 512
          %1880 = vsyncadd %s1865, %s1879
          %s1881 = smul.addr %s25, 24
          %s1882 = sadd.s32 %s1877, %s1881
          %s1883 = smul.addr %s1882, 64
          %s1884 = scalar_lea.hbm %s3, %s1883
          %s1886 = sshll.u32 %s1868, 4
          %s1887 = int_to_ptr.vmem [resolvable:$true] %s1886
          %1889 = dma.vmem_to_hbm [thread:$0]  %s1887, 512, %s1884, %s1865
        $region60: #{tpu_custom_call.1} parent=27 // pred_fallthru
          _
        // Predicated region
        $region61: #{tpu_custom_call.1} parent=27 // pred_check
          %p1890 = pneg %p128
        $region62: #{tpu_custom_call.1} parent=27 // pred_check_branch
          %1892 = sbr.rel (%p1890) target = $region64
        $region63: #{tpu_custom_call.1} parent=27 // pred_region
          _
        $region64: #{tpu_custom_call.1} parent=27 // pred_fallthru
          _
      $region28: #{tpu_custom_call.1} parent=5 // pred_fallthru
        _
      %p1893 = scmp.le.s32.totalorder 2, %s16
      // Predicated region
      $region65: #{tpu_custom_call.1} parent=5 // pred_check
        %p1894 = pneg %p1893
      $region66: #{tpu_custom_call.1} parent=5 // pred_check_branch
        %1896 = sbr.rel (%p1894) target = $region68
      $region67: #{tpu_custom_call.1} parent=5 // pred_region
        %s1897 = ssub.s32 %s16, 2
        // Predicated region
        $region69: #{tpu_custom_call.1} parent=67 // pred_check
          %p1898 = pneg %p108
        $region70: #{tpu_custom_call.1} parent=67 // pred_check_branch
          %1900 = sbr.rel (%p1898) target = $region72
        $region71: #{tpu_custom_call.1} parent=67 // pred_region
          %s1901 = sand.u32 %s93, 1
          %s1902 = scalar_lea.sflag [#allocation9], %s1901
          %s1903 = sand.u32 %s93, 1
          %s1904 = smul.addr %s1903, 32
          %s1905 = scalar_lea.vmem [#allocation12], %s1904
          %1906 = dma.done %s1902, 512
        $region72: #{tpu_custom_call.1} parent=67 // pred_fallthru
          _
        // Predicated region
        $region73: #{tpu_custom_call.1} parent=67 // pred_check
          %p1907 = pneg %p134
        $region74: #{tpu_custom_call.1} parent=67 // pred_check_branch
          %1909 = sbr.rel (%p1907) target = $region76
        $region75: #{tpu_custom_call.1} parent=67 // pred_region
          %p1910 = scmp.lt.s32.totalorder %s27, 1
          %s1911 = scalar_select %p1910, %s27, 1
          %s1912 = smul.addr %s1911, 8
          %s1913 = scalar_lea.vmem %s4, %s1912
        $region76: #{tpu_custom_call.1} parent=67 // pred_fallthru
          _
      $region68: #{tpu_custom_call.1} parent=5 // pred_fallthru
        _
    $region6: #{tpu_custom_call.1} parent=1 // loop_footer
      %s20 = sadd.s32 1, %s16
    $region7: #{tpu_custom_call.1} parent=1 // loop_footer_branch
      %15 = sbr.rel target = $region3
    $region8: #{tpu_custom_call.1} parent=1 // loop_exit
      _
    %1914 = vsyncpa [#allocation8], 1
    %s1915 = scalar_lea.sflag [#allocation8], 1
    %1916 = vsyncpa %s1915, 1
    %1917 = vsyncpa [#allocation11], 1
    %1918 = vsyncpa [#allocation9], 1
    %s1919 = scalar_lea.sflag [#allocation9], 1
    %1920 = vsyncpa %s1919, 1
  %1921 = vsyncmov [#allocation3]
  %s1922 = vpop.sfrf %1921
  %p1923 = scmp.eq.s32.totalorder %s1922, 0
  %p1924 = pneg %p1923
  %1926 = shalt.err (%p1924)
  %s1927 = scalar_lea.sflag [#allocation3], 1
  %1928 = vsyncmov %s1927
  %s1929 = vpop.sfrf %1928
  %p1930 = scmp.eq.s32.totalorder %s1929, 0
  %p1931 = pneg %p1930
  %1933 = shalt.err (%p1931)
  %s1934 = scalar_lea.sflag [#allocation3], 2
  %1935 = vsyncmov %s1934
  %s1936 = vpop.sfrf %1935
  %p1937 = scmp.eq.s32.totalorder %s1936, 0
  %p1938 = pneg %p1937
  %1940 = shalt.err (%p1938)
  %s1941 = scalar_lea.sflag [#allocation3], 3
  %1942 = vsyncmov %s1941
  %s1943 = vpop.sfrf %1942
  %p1944 = scmp.eq.s32.totalorder %s1943, 0
  %p1945 = pneg %p1944
  %1947 = shalt.err (%p1945)

</llo_original>
